<compile_context>
chip_gen: v7x
topology: tpu7x:2x2x1
jax: 0.10.0
libtpu: 0.0.40
codegen_flags: <defaults>
</compile_context>

<pallas_src>
import functools

import numpy as np

import jax
import jax.numpy as jnp
from jax.experimental import pallas as pl
from jax.experimental.pallas import tpu as pltpu


def _sscp_block_kernel(patches_ref, w_ref, gamma_ref, cs_mean_ref, bsel_ref,
                       out_ref, *, eps):
    c = out_ref.shape[1]                                   # number of real channels
    hi = jax.lax.Precision.HIGHEST

    p = patches_ref[0]                                     # [K, M]   (M lane-dense)
    w = w_ref[...]                                         # [C+1, K] last row = column sums

    # Conv as a matmul; extra output row is the channel sum s1 (folded, no XLU reduce).
    xa = jnp.dot(w, p, preferred_element_type=jnp.float32, precision=hi)   # [C+1, M]
    x = xa[:c]                                             # [C, M]
    s1 = xa[c:c + 1]                                       # [1, M] = sum_c x
    s2 = jnp.sum(x * x, axis=0, keepdims=True)             # [1, M] = sum_c x^2 (sublane reduce)

    # One matmul produces both cumulative-mean and cumulative-E[x^2] per time step:
    # cs_mean folds segmented time-sum, cumsum over T and 1/count.
    stats = jnp.dot(jnp.concatenate([s1, s2], axis=0), cs_mean_ref[...],
                    preferred_element_type=jnp.float32, precision=hi)       # [2, T]
    mean_t = stats[0:1]                                    # [1, T]
    var_t = jnp.maximum(stats[1:2] - mean_t * mean_t, 0.0)  # guard cancellation
    inv_t = jax.lax.rsqrt(var_t + eps)                     # [1, T] (EUP)

    # One matmul broadcasts (mean, inv_std) back to the M positions.
    bc = jnp.dot(jnp.concatenate([mean_t, inv_t], axis=0), bsel_ref[...],
                 preferred_element_type=jnp.float32, precision=hi)          # [2, M]

    normed = (x - bc[0:1]) * bc[1:2] * gamma_ref[...]      # gamma: [C, 1] per-channel scale
    out_ref[0] = jnp.maximum(normed, 0.0).astype(out_ref.dtype)   # ReLU, lane-dense store


def _default_fold_batch():
    # v7x has 2 TensorCores/chip: keep >=2 parallel grid steps (one per batch).
    # Single-TC parts (v5e/v6e): fold the batch into one wider grid step.
    try:
        kind = jax.devices()[0].device_kind.lower()
    except Exception:
        return True
    return not ("v7" in kind or "7x" in kind)


def audio_sscp_conv_block(x, conv_weight, norm_weight, *, stride, manual_padding, eps,
                          fold_batch=None):
    """x: NCHW [B, C_in, T, F]; conv_weight: [C_out, C_in, kh, kw]; norm_weight: [C_out]."""
    B, c_in, T, F = x.shape
    c_out, c_in_w, kh, kw = conv_weight.shape
    assert c_in == c_in_w
    pad_f_l, pad_f_r, pad_t_t, pad_t_b = manual_padding  # torch F.pad order on 4D NCHW
    sh, sw = stride

    if fold_batch is None:
        fold_batch = _default_fold_batch()

    xp = jnp.pad(x.astype(jnp.float32),
                 ((0, 0), (0, 0), (pad_t_t, pad_t_b), (pad_f_l, pad_f_r)))
    t_pad = T + pad_t_t + pad_t_b
    f_pad = F + pad_f_l + pad_f_r
    t_out = (t_pad - kh) // sh + 1
    f_out = (f_pad - kw) // sw + 1
    M = t_out * f_out
    K = c_in * kh * kw

    # im2col glue -> K on sublanes, M lane-dense.
    cols = []
    for cin in range(c_in):
        for dh in range(kh):
            for dw in range(kw):
                cols.append(
                    xp[:, cin,
                       dh:dh + sh * (t_out - 1) + 1:sh,
                       dw:dw + sw * (f_out - 1) + 1:sw].reshape(B, M))

    do_fold = bool(fold_batch) and B > 1
    if do_fold:
        patches = jnp.stack(cols, axis=0).reshape(1, K, B * M)   # [1, K, B*M]
        n_steps, m_eff, t_eff = 1, B * M, B * t_out
    else:
        patches = jnp.stack(cols, axis=1)                        # [B, K, M]
        n_steps, m_eff, t_eff = B, M, t_out

    # Weight as [C_out, K] plus a folded channel-sum row -> [C_out+1, K].
    w_mat = conv_weight.astype(jnp.float32).reshape(c_out, K)
    w_aug = jnp.concatenate([w_mat, jnp.sum(w_mat, axis=0, keepdims=True)], axis=0)
    gamma = norm_weight.astype(jnp.float32).reshape(c_out, 1)

    # Norm selectors: pure numpy config constants (no XLA glue; fetched once).
    m_idx = np.arange(M)
    t_idx = np.arange(t_out)
    seg = m_idx // f_out                                          # time step of position m
    counts = np.maximum(((t_idx + 1) * f_out * c_out).astype(np.float32), 1.0)
    cs_np = (seg[:, None] <= t_idx[None, :]).astype(np.float32) / counts[None, :]   # [M, T]
    bs_np = (seg[None, :] == t_idx[:, None]).astype(np.float32)                      # [T, M]
    if do_fold:
        eye = np.eye(B, dtype=np.float32)
        cs_np = np.kron(eye, cs_np)    # [B*M, B*T] block-diagonal (batches stay separate)
        bs_np = np.kron(eye, bs_np)    # [B*T, B*M]
    cs_mean = jnp.asarray(cs_np)
    bsel = jnp.asarray(bs_np)

    kernel = functools.partial(_sscp_block_kernel, eps=float(eps))

    bytes_f32 = 4
    cost = pl.CostEstimate(
        flops=int(2 * n_steps * ((c_out + 1) * K * m_eff + 2 * m_eff * t_eff + 2 * t_eff * m_eff)
                  + 8 * n_steps * c_out * m_eff),
        transcendentals=int(n_steps * t_eff),
        bytes_accessed=int(bytes_f32 * (patches.size + w_aug.size + gamma.size
                                        + cs_mean.size + bsel.size
                                        + n_steps * c_out * m_eff)),
    )

    out = pl.pallas_call(
        kernel,
        out_shape=jax.ShapeDtypeStruct((n_steps, c_out, m_eff), jnp.float32),
        grid=(n_steps,),
        in_specs=[
            pl.BlockSpec((1, K, m_eff), lambda b: (b, 0, 0)),
            pl.BlockSpec((c_out + 1, K), lambda b: (0, 0)),
            pl.BlockSpec((c_out, 1), lambda b: (0, 0)),
            pl.BlockSpec((m_eff, t_eff), lambda b: (0, 0)),
            pl.BlockSpec((t_eff, m_eff), lambda b: (0, 0)),
        ],
        out_specs=pl.BlockSpec((1, c_out, m_eff), lambda b: (b, 0, 0)),
        compiler_params=pltpu.CompilerParams(dimension_semantics=("parallel",)),
        cost_estimate=cost,
    )(patches, w_aug, gamma, cs_mean, bsel)

    if do_fold:
        # [1, C, B*M] -> [C, B, T, F] -> NCHW (tiny host transpose, folded path only).
        return jnp.transpose(out.reshape(c_out, B, t_out, f_out), (1, 0, 2, 3))
    # [B, C, M] -> NCHW: pure reshape, no transpose.
    return out.reshape(B, c_out, t_out, f_out)


def _reference(x, conv_weight, norm_weight, stride, manual_padding, eps):
    """Pure-JAX replication of the PyTorch forward (mask=None path)."""
    pad_f_l, pad_f_r, pad_t_t, pad_t_b = manual_padding
    xp = jnp.pad(x.astype(jnp.float32),
                 ((0, 0), (0, 0), (pad_t_t, pad_t_b), (pad_f_l, pad_f_r)))
    conv = jax.lax.conv_general_dilated(
        xp, conv_weight.astype(jnp.float32), window_strides=stride, padding='VALID',
        dimension_numbers=('NCHW', 'OIHW', 'NCHW'),
        precision=jax.lax.Precision.HIGHEST)
    y = jnp.transpose(conv, (0, 2, 3, 1))                          # [B, T, F, C]
    sum_t = jnp.sum(y, axis=(2, 3), keepdims=True)
    cum_sum = jnp.cumsum(sum_t, axis=1)
    count_t = jnp.full_like(sum_t, y.shape[2] * y.shape[3])
    cum_count = jnp.cumsum(count_t, axis=1)
    safe = jnp.maximum(cum_count, 1.0)
    mean = cum_sum / safe
    cum_sq = jnp.cumsum(jnp.sum((y - mean) ** 2, axis=(2, 3), keepdims=True), axis=1)
    var = cum_sq / safe
    normed = (y - mean) * jax.lax.rsqrt(var + eps)
    normed = normed * norm_weight.reshape(1, 1, 1, -1)
    out = jnp.transpose(normed, (0, 3, 1, 2))
    return jnp.maximum(out, 0.0)


if __name__ == "__main__":
    # Config-equivalent: idx=0, sscp_conv_channel_size[0]=8, kernel (3,3), stride (2,2),
    # input_freq_dim=32, manual_padding=(1,1,0,2), group_norm_eps=1e-3.
    B, c_in, T, F = 2, 1, 16, 32
    c_out, kh, kw = 8, 3, 3
    stride = (2, 2)
    manual_padding = (1, 1, 0, 2)   # (freq_left, freq_right, time_top, time_bottom)
    eps = 1e-3

    key = jax.random.PRNGKey(0)
    k_x, k_w = jax.random.split(key)
    x = jax.random.normal(k_x, (B, c_in, T, F), dtype=jnp.float32)
    conv_weight = 0.1 * jax.random.normal(k_w, (c_out, c_in, kh, kw), dtype=jnp.float32)
    norm_weight = jnp.linspace(0.5, 1.5, c_out, dtype=jnp.float32)  # per-channel scale

    ref = _reference(x, conv_weight, norm_weight, stride, manual_padding, eps)

    # Exercise both structural variants: per-batch parallel grid (v7x-style) and the
    # single-step batch-folded layout (v5e/v6e-style). Both must match the reference.
    for fold in (False, True):
        out = audio_sscp_conv_block(x, conv_weight, norm_weight,
                                    stride=stride, manual_padding=manual_padding,
                                    eps=eps, fold_batch=fold)
        out = jax.block_until_ready(out)
        assert out.shape == (B, c_out, 8, 16), (fold, out.shape)
        max_err = float(jnp.max(jnp.abs(out - ref)))
        assert max_err < 1e-2, f"fold_batch={fold}: max abs err {max_err}"

    print("KERNEL_OK")
</pallas_src>

<mosaic_0001>
module attributes {stable_mosaic.version = 11 : i64} {
  func.func @_sscp_block_kernel(%arg0: i32, %arg1: memref<1x9x128xf32, #tpu.memory_space<vmem>>, %arg2: memref<9x9xf32, #tpu.memory_space<vmem>>, %arg3: memref<8x1xf32, #tpu.memory_space<vmem>>, %arg4: memref<128x8xf32, #tpu.memory_space<vmem>>, %arg5: memref<8x128xf32, #tpu.memory_space<vmem>>, %arg6: memref<1x8x128xf32, #tpu.memory_space<vmem>>) attributes {dimension_semantics = [#tpu.dimension_semantics<parallel>], iteration_bounds = array<i64: 2>, scalar_prefetch = 0 : i64, scratch_operands = 0 : i64, tpu.core_type = #tpu.core_type<tc>, window_params = [{transform_indices = @transform_0, window_bounds = array<i64: 1, 9, 128>}, {pipeline_mode = #tpu.pipeline_mode<synchronous>, transform_indices = @transform_1, window_bounds = array<i64: 9, 9>}, {pipeline_mode = #tpu.pipeline_mode<synchronous>, transform_indices = @transform_2, window_bounds = array<i64: 8, 1>}, {pipeline_mode = #tpu.pipeline_mode<synchronous>, transform_indices = @transform_3, window_bounds = array<i64: 128, 8>}, {pipeline_mode = #tpu.pipeline_mode<synchronous>, transform_indices = @transform_4, window_bounds = array<i64: 8, 128>}, {transform_indices = @transform_5, window_bounds = array<i64: 1, 8, 128>}]} {
    %c0 = arith.constant 0 : index
    %c0_0 = arith.constant 0 : index
    %c0_1 = arith.constant 0 : index
    %0 = vector.load %arg1[%c0, %c0_0, %c0_1] : memref<1x9x128xf32, #tpu.memory_space<vmem>>, vector<1x9x128xf32>
    %1 = vector.shape_cast %0 : vector<1x9x128xf32> to vector<9x128xf32>
    %c0_2 = arith.constant 0 : index
    %c0_3 = arith.constant 0 : index
    %2 = vector.load %arg2[%c0_2, %c0_3] : memref<9x9xf32, #tpu.memory_space<vmem>>, vector<9x9xf32>
    %cst = arith.constant dense<0.000000e+00> : vector<9x128xf32>
    %3 = tpu.matmul %2, %1, %cst {dimension_numbers = #tpu.dot_dimension_numbers<[1], [0], [0], [1], [0, 0, 1, 1], [], []>, precision = #tpu.contract_precision<fp32>} : vector<9x9xf32>, vector<9x128xf32>, vector<9x128xf32> -> vector<9x128xf32>
    %4 = vector.extract_strided_slice %3 {offsets = [0, 0], sizes = [8, 128], strides = [1, 1]} : vector<9x128xf32> to vector<8x128xf32>
    %5 = vector.extract_strided_slice %3 {offsets = [8, 0], sizes = [1, 128], strides = [1, 1]} : vector<9x128xf32> to vector<1x128xf32>
    %6 = arith.mulf %4, %4 : vector<8x128xf32>
    %cst_4 = arith.constant dense<0.000000e+00> : vector<128xf32>
    %7 = vector.multi_reduction <add>, %6, %cst_4 [0] : vector<8x128xf32> to vector<128xf32>
    %8 = vector.shape_cast %7 : vector<128xf32> to vector<1x128xf32>
    %9 = tpu.concatenate %5, %8 in 0 : vector<1x128xf32>, vector<1x128xf32> -> vector<2x128xf32>
    %c0_5 = arith.constant 0 : index
    %c0_6 = arith.constant 0 : index
    %10 = vector.load %arg4[%c0_5, %c0_6] : memref<128x8xf32, #tpu.memory_space<vmem>>, vector<128x8xf32>
    %cst_7 = arith.constant dense<0.000000e+00> : vector<2x8xf32>
    %11 = tpu.matmul %9, %10, %cst_7 {dimension_numbers = #tpu.dot_dimension_numbers<[1], [0], [0], [1], [0, 0, 1, 1], [], []>, precision = #tpu.contract_precision<fp32>} : vector<2x128xf32>, vector<128x8xf32>, vector<2x8xf32> -> vector<2x8xf32>
    %12 = vector.extract_strided_slice %11 {offsets = [0, 0], sizes = [1, 8], strides = [1, 1]} : vector<2x8xf32> to vector<1x8xf32>
    %13 = vector.extract_strided_slice %11 {offsets = [1, 0], sizes = [1, 8], strides = [1, 1]} : vector<2x8xf32> to vector<1x8xf32>
    %14 = arith.mulf %12, %12 : vector<1x8xf32>
    %15 = arith.subf %13, %14 : vector<1x8xf32>
    %cst_8 = arith.constant 0.000000e+00 : f32
    %16 = vector.broadcast %cst_8 : f32 to vector<1x8xf32>
    %17 = arith.maximumf %15, %16 : vector<1x8xf32>
    %cst_9 = arith.constant 1.000000e-03 : f32
    %18 = vector.broadcast %cst_9 : f32 to vector<1x8xf32>
    %19 = arith.addf %17, %18 : vector<1x8xf32>
    %20 = math.rsqrt %19 : vector<1x8xf32>
    %21 = tpu.concatenate %12, %20 in 0 : vector<1x8xf32>, vector<1x8xf32> -> vector<2x8xf32>
    %c0_10 = arith.constant 0 : index
    %c0_11 = arith.constant 0 : index
    %22 = vector.load %arg5[%c0_10, %c0_11] : memref<8x128xf32, #tpu.memory_space<vmem>>, vector<8x128xf32>
    %cst_12 = arith.constant dense<0.000000e+00> : vector<2x128xf32>
    %23 = tpu.matmul %21, %22, %cst_12 {dimension_numbers = #tpu.dot_dimension_numbers<[1], [0], [0], [1], [0, 0, 1, 1], [], []>, precision = #tpu.contract_precision<fp32>} : vector<2x8xf32>, vector<8x128xf32>, vector<2x128xf32> -> vector<2x128xf32>
    %24 = vector.extract_strided_slice %23 {offsets = [0, 0], sizes = [1, 128], strides = [1, 1]} : vector<2x128xf32> to vector<1x128xf32>
    %25 = vector.broadcast %24 : vector<1x128xf32> to vector<8x128xf32>
    %26 = arith.subf %4, %25 : vector<8x128xf32>
    %27 = vector.extract_strided_slice %23 {offsets = [1, 0], sizes = [1, 128], strides = [1, 1]} : vector<2x128xf32> to vector<1x128xf32>
    %28 = vector.broadcast %27 : vector<1x128xf32> to vector<8x128xf32>
    %29 = arith.mulf %26, %28 : vector<8x128xf32>
    %c0_13 = arith.constant 0 : index
    %c0_14 = arith.constant 0 : index
    %30 = vector.load %arg3[%c0_13, %c0_14] : memref<8x1xf32, #tpu.memory_space<vmem>>, vector<8x1xf32>
    %31 = vector.broadcast %30 : vector<8x1xf32> to vector<8x128xf32>
    %32 = arith.mulf %29, %31 : vector<8x128xf32>
    %cst_15 = arith.constant 0.000000e+00 : f32
    %33 = vector.broadcast %cst_15 : f32 to vector<8x128xf32>
    %34 = arith.maximumf %32, %33 : vector<8x128xf32>
    %c0_16 = arith.constant 0 : index
    %c0_17 = arith.constant 0 : index
    %c0_18 = arith.constant 0 : index
    %35 = vector.load %arg6[%c0_16, %c0_17, %c0_18] : memref<1x8x128xf32, #tpu.memory_space<vmem>>, vector<1x8x128xf32>
    %36 = vector.shape_cast %35 : vector<1x8x128xf32> to vector<8x128xf32>
    %37 = vector.shape_cast %34 : vector<8x128xf32> to vector<1x8x128xf32>
    tpu.vector_store %arg6[%c0_16, %c0_17, %c0_18], %37 {strides = array<i32>} : memref<1x8x128xf32, #tpu.memory_space<vmem>>, vector<1x8x128xf32>,
    return
  }
  func.func @transform_0(%arg0: i32) -> (i32, i32, i32) {
    %c0_i32 = arith.constant 0 : i32
    %c0_i32_0 = arith.constant 0 : i32
    %c0_i32_1 = arith.constant 0 : i32
    return %arg0, %c0_i32, %c0_i32_0 : i32, i32, i32
  }
  func.func @transform_1(%arg0: i32) -> (i32, i32) {
    %c0_i32 = arith.constant 0 : i32
    %c0_i32_0 = arith.constant 0 : i32
    %c0_i32_1 = arith.constant 0 : i32
    return %c0_i32, %c0_i32_0 : i32, i32
  }
  func.func @transform_2(%arg0: i32) -> (i32, i32) {
    %c0_i32 = arith.constant 0 : i32
    %c0_i32_0 = arith.constant 0 : i32
    %c0_i32_1 = arith.constant 0 : i32
    return %c0_i32, %c0_i32_0 : i32, i32
  }
  func.func @transform_3(%arg0: i32) -> (i32, i32) {
    %c0_i32 = arith.constant 0 : i32
    %c0_i32_0 = arith.constant 0 : i32
    %c0_i32_1 = arith.constant 0 : i32
    return %c0_i32, %c0_i32_0 : i32, i32
  }
  func.func @transform_4(%arg0: i32) -> (i32, i32) {
    %c0_i32 = arith.constant 0 : i32
    %c0_i32_0 = arith.constant 0 : i32
    %c0_i32_1 = arith.constant 0 : i32
    return %c0_i32, %c0_i32_0 : i32, i32
  }
  func.func @transform_5(%arg0: i32) -> (i32, i32, i32) {
    %c0_i32 = arith.constant 0 : i32
    %c0_i32_0 = arith.constant 0 : i32
    %c0_i32_1 = arith.constant 0 : i32
    return %arg0, %c0_i32, %c0_i32_0 : i32, i32, i32
  }
}

</mosaic_0001>

<llo_original>
// kernel: tpu_custom_call.1
$region0: #{tpu_custom_call.1}
  #allocation0 [shape = 'u32[]', space=smem, size = 0x4, offset = 0x4, fixed_abs, tag = 'smem constant byte address 0x4 - core index']
  #allocation1 [shape = 'u32[144,128]{1,0:T(1,128)}', space=vmem, size = 0x12000, scoped, tag = 'internal scratch']
  %s0 = inlined_call_operand.vmem [shape: f32[2,9,128], index: 0, kind: input, shape index: {}]
  %s1 = inlined_call_operand.vmem [shape: f32[9,9], index: 1, kind: input, shape index: {}]
  %s2 = inlined_call_operand.vmem [shape: f32[8,1], index: 2, kind: input, shape index: {}]
  %s3 = inlined_call_operand.vmem [shape: f32[128,8], index: 3, kind: input, shape index: {}]
  %s4 = inlined_call_operand.vmem [shape: f32[8,128], index: 4, kind: input, shape index: {}]
  %s5 = inlined_call_operand.hbm [shape: f32[2,8,128], index: 5, kind: output, shape index: {}]
  %s6 = sld [smem:[#allocation0]]
  $region53: #{tpu_custom_call.1} parent=0
    _
  %s8 = ssub.s32 1, %s6
  %s9 = scalar_select 0, %s8, %s6
  $region1: #{tpu_custom_call.1} parent=0
    #allocation2 [shape = 'u8[8192]{0}', space=vmem, size = 0x2000, scoped, tag = 'output window, operand 0']
    #allocation3 [shape = 's32[2]{0}', space=sflag, size = 0x8, scoped, tag = 'scoped memory for tpu_custom_call.1']
    %10 = vsyncpa [#allocation3], 0
    %s11 = scalar_lea.sflag [#allocation3], 1
    %12 = vsyncpa %s11, 0
    loop: start=0, step=1, limit=4
    $region2: #{tpu_custom_call.1} parent=1 // loop_pre_header
      _
    $region3: #{tpu_custom_call.1} parent=1 // loop_header
      %s14 = sphi 0, %s18
      %p15 = scmp.ge.s32.totalorder %s14, 4
      %s24 = sphi 0, %s26
      %s27 = sphi 0, %s24
      %s28 = sphi 0, %s27
      %s44 = sphi 0, %s28
      %s48 = sphi 0, %s48
      %s50 = sphi 0, %s48
      %s51 = sphi 0, %s50
      %s65 = sphi 0, %s51
      %s69 = sphi 0, %s69
      %s71 = sphi 0, %s69
      %s72 = sphi 0, %s71
      %s86 = sphi 0, %s72
      %s90 = sphi 0, %s90
      %s92 = sphi 0, %s90
      %s93 = sphi 0, %s92
      %s107 = sphi 0, %s93
      %s111 = sphi 0, %s111
      %s113 = sphi 0, %s111
      %s114 = sphi 0, %s113
      %s128 = sphi 0, %s114
      %s134 = sphi 0, %s136
      %s137 = sphi 0, %s134
      %s138 = sphi 0, %s137
      %s154 = sphi 0, %s138
    $region4: #{tpu_custom_call.1} parent=1 // loop_header_branch
      %17 = sbr.rel (%p15) target = $region8
    $region5: #{tpu_custom_call.1} parent=1 // loop_body
      %s19 = ssub.s32 %s14, 1
      %s20 = ssub.s32 %s14, 2
      %s21 = sadd.s32 %s14, 1
      %s22 = ssub.s32 %s14, %s21
      %p23 = scmp.eq.s32.totalorder %s22, 0
      %s25 = sadd.s32 %s24, 1
      %s26 = scalar_select %p23, %s24, %s25
      %p29 = pneg %p23
      %p30 = scmp.eq.s32.totalorder %s14, 1
      %p31 = por %p29, %p30
      %p32 = scmp.ne.s32.totalorder %s24, %s27
      %p33 = scmp.eq.s32.totalorder %s14, 0
      %p34 = por %p32, %p33
      %p35 = scmp.ne.s32.totalorder %s24, %s27
      %p36 = scmp.eq.s32.totalorder %s19, 1
      %p37 = por %p35, %p36
      %p38 = scmp.ne.s32.totalorder %s27, %s28
      %p39 = scmp.eq.s32.totalorder %s19, 0
      %p40 = por %p38, %p39
      %p41 = scmp.ne.s32.totalorder %s27, %s28
      %p42 = scmp.eq.s32.totalorder %s20, 1
      %p43 = por %p41, %p42
      %p45 = scmp.ne.s32.totalorder %s28, %s44
      %p46 = scmp.eq.s32.totalorder %s20, 0
      %p47 = por %p45, %p46
      %s49 = sadd.s32 %s48, 1
      %p52 = scmp.eq.s32.totalorder %s14, 1
      %p53 = scmp.ne.s32.totalorder %s48, %s50
      %p54 = scmp.eq.s32.totalorder %s14, 0
      %p55 = por %p53, %p54
      %p56 = scmp.ne.s32.totalorder %s48, %s50
      %p57 = scmp.eq.s32.totalorder %s19, 1
      %p58 = por %p56, %p57
      %p59 = scmp.ne.s32.totalorder %s50, %s51
      %p60 = scmp.eq.s32.totalorder %s19, 0
      %p61 = por %p59, %p60
      %p62 = scmp.ne.s32.totalorder %s50, %s51
      %p63 = scmp.eq.s32.totalorder %s20, 1
      %p64 = por %p62, %p63
      %p66 = scmp.ne.s32.totalorder %s51, %s65
      %p67 = scmp.eq.s32.totalorder %s20, 0
      %p68 = por %p66, %p67
      %s70 = sadd.s32 %s69, 1
      %p73 = scmp.eq.s32.totalorder %s14, 1
      %p74 = scmp.ne.s32.totalorder %s69, %s71
      %p75 = scmp.eq.s32.totalorder %s14, 0
      %p76 = por %p74, %p75
      %p77 = scmp.ne.s32.totalorder %s69, %s71
      %p78 = scmp.eq.s32.totalorder %s19, 1
      %p79 = por %p77, %p78
      %p80 = scmp.ne.s32.totalorder %s71, %s72
      %p81 = scmp.eq.s32.totalorder %s19, 0
      %p82 = por %p80, %p81
      %p83 = scmp.ne.s32.totalorder %s71, %s72
      %p84 = scmp.eq.s32.totalorder %s20, 1
      %p85 = por %p83, %p84
      %p87 = scmp.ne.s32.totalorder %s72, %s86
      %p88 = scmp.eq.s32.totalorder %s20, 0
      %p89 = por %p87, %p88
      %s91 = sadd.s32 %s90, 1
      %p94 = scmp.eq.s32.totalorder %s14, 1
      %p95 = scmp.ne.s32.totalorder %s90, %s92
      %p96 = scmp.eq.s32.totalorder %s14, 0
      %p97 = por %p95, %p96
      %p98 = scmp.ne.s32.totalorder %s90, %s92
      %p99 = scmp.eq.s32.totalorder %s19, 1
      %p100 = por %p98, %p99
      %p101 = scmp.ne.s32.totalorder %s92, %s93
      %p102 = scmp.eq.s32.totalorder %s19, 0
      %p103 = por %p101, %p102
      %p104 = scmp.ne.s32.totalorder %s92, %s93
      %p105 = scmp.eq.s32.totalorder %s20, 1
      %p106 = por %p104, %p105
      %p108 = scmp.ne.s32.totalorder %s93, %s107
      %p109 = scmp.eq.s32.totalorder %s20, 0
      %p110 = por %p108, %p109
      %s112 = sadd.s32 %s111, 1
      %p115 = scmp.eq.s32.totalorder %s14, 1
      %p116 = scmp.ne.s32.totalorder %s111, %s113
      %p117 = scmp.eq.s32.totalorder %s14, 0
      %p118 = por %p116, %p117
      %p119 = scmp.ne.s32.totalorder %s111, %s113
      %p120 = scmp.eq.s32.totalorder %s19, 1
      %p121 = por %p119, %p120
      %p122 = scmp.ne.s32.totalorder %s113, %s114
      %p123 = scmp.eq.s32.totalorder %s19, 0
      %p124 = por %p122, %p123
      %p125 = scmp.ne.s32.totalorder %s113, %s114
      %p126 = scmp.eq.s32.totalorder %s20, 1
      %p127 = por %p125, %p126
      %p129 = scmp.ne.s32.totalorder %s114, %s128
      %p130 = scmp.eq.s32.totalorder %s20, 0
      %p131 = por %p129, %p130
      %s132 = ssub.s32 %s14, %s21
      %p133 = scmp.eq.s32.totalorder %s132, 0
      %s135 = sadd.s32 %s134, 1
      %s136 = scalar_select %p133, %s134, %s135
      %p139 = pneg %p133
      %p140 = scmp.eq.s32.totalorder %s14, 1
      %p141 = por %p139, %p140
      %p142 = scmp.ne.s32.totalorder %s134, %s137
      %p143 = scmp.eq.s32.totalorder %s14, 0
      %p144 = por %p142, %p143
      %p145 = scmp.ne.s32.totalorder %s134, %s137
      %p146 = scmp.eq.s32.totalorder %s19, 1
      %p147 = por %p145, %p146
      %p148 = scmp.ne.s32.totalorder %s137, %s138
      %p149 = scmp.eq.s32.totalorder %s19, 0
      %p150 = por %p148, %p149
      %p151 = scmp.ne.s32.totalorder %s137, %s138
      %p152 = scmp.eq.s32.totalorder %s20, 1
      %p153 = por %p151, %p152
      %p155 = scmp.ne.s32.totalorder %s138, %s154
      %p156 = scmp.eq.s32.totalorder %s20, 0
      %p157 = por %p155, %p156
      %p158 = scmp.le.s32.totalorder 1, %s14
      %p159 = scmp.lt.s32.totalorder %s14, 3
      %p160 = pnand %p158, %p159
      %p161 = pneg %p160
      // Predicated region
      $region9: #{tpu_custom_call.1} parent=5 // pred_check
        _
      $region10: #{tpu_custom_call.1} parent=5 // pred_check_branch
        %163 = sbr.rel (%p160) target = $region12
      $region11: #{tpu_custom_call.1} parent=5 // pred_region
        %s164 = ssub.s32 %s14, 1
        // Predicated region
        $region13: #{tpu_custom_call.1} parent=11 // pred_check
          %p165 = pneg %p61
        $region14: #{tpu_custom_call.1} parent=11 // pred_check_branch
          %167 = sbr.rel (%p165) target = $region16
        $region15: #{tpu_custom_call.1} parent=11 // pred_region
          _
        $region16: #{tpu_custom_call.1} parent=11 // pred_fallthru
          _
        // Predicated region
        $region17: #{tpu_custom_call.1} parent=11 // pred_check
          %p168 = pneg %p82
        $region18: #{tpu_custom_call.1} parent=11 // pred_check_branch
          %170 = sbr.rel (%p168) target = $region20
        $region19: #{tpu_custom_call.1} parent=11 // pred_region
          _
        $region20: #{tpu_custom_call.1} parent=11 // pred_fallthru
          _
        // Predicated region
        $region21: #{tpu_custom_call.1} parent=11 // pred_check
          %p171 = pneg %p103
        $region22: #{tpu_custom_call.1} parent=11 // pred_check_branch
          %173 = sbr.rel (%p171) target = $region24
        $region23: #{tpu_custom_call.1} parent=11 // pred_region
          _
        $region24: #{tpu_custom_call.1} parent=11 // pred_fallthru
          _
        // Predicated region
        $region25: #{tpu_custom_call.1} parent=11 // pred_check
          %p174 = pneg %p124
        $region26: #{tpu_custom_call.1} parent=11 // pred_check_branch
          %176 = sbr.rel (%p174) target = $region28
        $region27: #{tpu_custom_call.1} parent=11 // pred_region
          _
        $region28: #{tpu_custom_call.1} parent=11 // pred_fallthru
          _
      $region12: #{tpu_custom_call.1} parent=5 // pred_fallthru
        _
      %p177 = scmp.lt.s32.totalorder %s14, 2
      // Predicated region
      $region29: #{tpu_custom_call.1} parent=5 // pred_check
        %p178 = pneg %p177
      $region30: #{tpu_custom_call.1} parent=5 // pred_check_branch
        %180 = sbr.rel (%p178) target = $region32
      $region31: #{tpu_custom_call.1} parent=5 // pred_region
        // Predicated region
        $region33: #{tpu_custom_call.1} parent=31 // pred_check
          %p181 = pneg %p34
        $region34: #{tpu_custom_call.1} parent=31 // pred_check_branch
          %183 = sbr.rel (%p181) target = $region36
        $region35: #{tpu_custom_call.1} parent=31 // pred_region
          %p184 = scmp.lt.s32.totalorder %s14, 1
          %s185 = scalar_select %p184, %s14, 1
          %s186 = smul.addr %s185, 2
          %s187 = smul.addr %s186, 8
          %s188 = scalar_lea.vmem %s0, %s187
        $region36: #{tpu_custom_call.1} parent=31 // pred_fallthru
          _
      $region32: #{tpu_custom_call.1} parent=5 // pred_fallthru
        _
      %p189 = scmp.le.s32.totalorder 1, %s14
      %p190 = scmp.lt.s32.totalorder %s14, 3
      %p191 = pnand %p189, %p190
      %p192 = pneg %p191
      // Predicated region
      $region37: #{tpu_custom_call.1} parent=5 // pred_check
        _
      $region38: #{tpu_custom_call.1} parent=5 // pred_check_branch
        %194 = sbr.rel (%p191) target = $region40
      $region39: #{tpu_custom_call.1} parent=5 // pred_region
        %s195 = ssub.s32 %s14, 1
        %p196 = scmp.lt.s32.totalorder %s19, 1
        %s197 = scalar_select %p196, %s19, 1
        %s198 = smul.addr %s197, 2
        %s199 = smul.addr %s198, 8
        %s200 = scalar_lea.vmem %s0, %s199
        %p201 = pneg %p40
        %p202 = pneg %p37
        %p203 = pneg %p61
        %p204 = pneg %p58
        %p205 = pneg %p82
        %p206 = pneg %p79
        %p207 = pneg %p103
        %p208 = pneg %p100
        %p209 = pneg %p124
        %p210 = pneg %p121
        %p211 = pneg %p150
        %p212 = pneg %p147
        %s213 = sand.u32 %s137, 1
        %s214 = scalar_lea.sflag [#allocation3], %s213
        %s215 = sand.u32 %s137, 1
        %s216 = smul.addr %s215, 8
        %s217 = scalar_lea.vmem [#allocation2], %s216
        %p218 = scmp.lt.s32.totalorder %s19, 1
        %s219 = scalar_select %p218, %s19, 1
        %s220 = smul.addr %s219, 2
        %s221 = smul.addr %s220, 8
        %s222 = scalar_lea.vmem %s0, %s221
        %v223 = vld [vmem:[%s222] sm:$0xff]
        %v224 = vld [vmem:[%s222 + $0x8] sm:$0x1]
        %v225 = vld [vmem:[%s1] sm:$0xff]
        %v226 = vld [vmem:[%s1 + $0x8] sm:$0x1]
        %vm227 = vcmask 72704
        %v229 = vsel %vm227, %v225, 0
        %v232 = vsel %vm227, %v226, 0
        %vm234 = vcmask 1040384
        %v236 = vsel %vm234, %v224, 0
        %238 = vmatprep.subr.mxu0 0.0
        %v239 = vand.u32 %v223, 4294901760
        %240 = vmatpush1.msra.mxu0 %v239
        %241 = vmatprep.subr.mxu0 0.0
        %v242 = vand.u32 %v236, 4294901760
        %243 = vmatpush1.msra.mxu0 %v242
        %244 = vmatprep.subr.mxu0 0.0
        %245 = vmatpush1.msra.mxu0 0.0
        %246 = vmatprep.subr.mxu0 0.0
        %247 = vmatpush1.msra.mxu0 0.0
        %248 = vmatprep.subr.mxu0 0.0
        %249 = vmatpush1.msra.mxu0 0.0
        %250 = vmatprep.subr.mxu0 0.0
        %251 = vmatpush1.msra.mxu0 0.0
        %252 = vmatprep.subr.mxu0 0.0
        %253 = vmatpush1.msra.mxu0 0.0
        %254 = vmatprep.subr.mxu0 0.0
        %255 = vmatpush1.msra.mxu0 0.0
        %256 = vmatprep.subr.mxu0 0.0
        %257 = vmatpush1.msra.mxu0 0.0
        %258 = vmatprep.subr.mxu0 0.0
        %259 = vmatpush1.msra.mxu0 0.0
        %260 = vmatprep.subr.mxu0 0.0
        %261 = vmatpush1.msra.mxu0 0.0
        %262 = vmatprep.subr.mxu0 0.0
        %263 = vmatpush1.msra.mxu0 0.0
        %264 = vmatprep.subr.mxu0 0.0
        %265 = vmatpush1.msra.mxu0 0.0
        %266 = vmatprep.subr.mxu0 0.0
        %267 = vmatpush1.msra.mxu0 0.0
        %268 = vmatprep.subr.mxu0 0.0
        %269 = vmatpush1.msra.mxu0 0.0
        %270 = vmatprep.subr.mxu0 0.0
        %271 = vmatpush1.msra.mxu0 0.0
        %272 = vmatprep.subr.mxu0 0.0
        %273 = vmatpush1.msra.mxu0 0.0
        %274 = vmatprep.subr.mxu0 0.0
        %275 = vmatpush1.msra.mxu0 0.0
        %276 = vmatprep.subr.mxu0 0.0
        %277 = vmatpush1.msra.mxu0 0.0
        %278 = vmatprep.subr.mxu0 0.0
        %279 = vmatpush1.msra.mxu0 0.0
        %280 = vmatprep.subr.mxu0 0.0
        %281 = vmatpush1.msra.mxu0 0.0
        %282 = vmatprep.subr.mxu0 0.0
        %283 = vmatpush1.msra.mxu0 0.0
        %284 = vmatprep.subr.mxu0 0.0
        %285 = vmatpush1.msra.mxu0 0.0
        %286 = vmatprep.subr.mxu0 0.0
        %287 = vmatpush1.msra.mxu0 0.0
        %288 = vmatprep.subr.mxu0 0.0
        %289 = vmatpush1.msra.mxu0 0.0
        %290 = vmatprep.subr.mxu0 0.0
        %291 = vmatpush1.msra.mxu0 0.0
        %292 = vmatprep.subr.mxu0 0.0
        %293 = vmatpush1.msra.mxu0 0.0
        %294 = vmatprep.subr.mxu0 0.0
        %295 = vmatpush1.msra.mxu0 0.0
        %296 = vmatprep.subr.mxu0 0.0
        %297 = vmatpush1.msra.mxu0 0.0
        %298 = vmatprep.subr.mxu0 0.0
        %299 = vmatpush1.msra.mxu0 0.0
        %300 = vmatprep.subr.mxu0 0.0
        %301 = vmatpush1.msra.mxu0 0.0
        %302 = vmatprep.subr.mxu0 0.0
        %303 = vmatpush1.msra.mxu0 0.0
        %304 = vmatprep.mubr.f32.mxu0 0.0
        %v305 = vand.u32 %v229, 4294901760
        %v306 = vsub.f32 %v229, %v305
        %v307 = vand.u32 %v306, 4294901760
        %v308 = vsub.f32 %v306, %v307
        %v309 = vand.u32 %v308, 4294901760
        %310 = vmatmul.mubr.f32.gmra.mrb[0].mxu0 %v309
        %v311 = vpop.f32.mrb[0].mxu0
        %v312 = vadd.f32 0.0, %v311
        %v313 = vpop.f32.mrb[0].mxu0
        %314 = vmatprep.mubr.f32.mxu0 0.0
        %v315 = vand.u32 %v232, 4294901760
        %v316 = vsub.f32 %v232, %v315
        %v317 = vand.u32 %v316, 4294901760
        %v318 = vsub.f32 %v316, %v317
        %v319 = vand.u32 %v318, 4294901760
        %320 = vmatmul.mubr.f32.gmra.mrb[0].mxu0 %v319
        %v321 = vpop.f32.mrb[0].mxu0
        %v322 = vadd.f32 0.0, %v321
        %v323 = vpop.f32.mrb[0].mxu0
        %324 = vdwg.mxu0
        %325 = vmatprep.subr.mxu0 0.0
        %v326 = vand.u32 %v223, 4294901760
        %v327 = vsub.f32 %v223, %v326
        %v328 = vand.u32 %v327, 4294901760
        %v329 = vsub.f32 %v327, %v328
        %v330 = vand.u32 %v329, 4294901760
        %331 = vmatpush1.msra.mxu0 %v330
        %332 = vmatprep.subr.mxu0 0.0
        %v333 = vand.u32 %v236, 4294901760
        %v334 = vsub.f32 %v236, %v333
        %v335 = vand.u32 %v334, 4294901760
        %v336 = vsub.f32 %v334, %v335
        %v337 = vand.u32 %v336, 4294901760
        %338 = vmatpush1.msra.mxu0 %v337
        %339 = vmatprep.subr.mxu0 0.0
        %340 = vmatpush1.msra.mxu0 0.0
        %341 = vmatprep.subr.mxu0 0.0
        %342 = vmatpush1.msra.mxu0 0.0
        %343 = vmatprep.subr.mxu0 0.0
        %344 = vmatpush1.msra.mxu0 0.0
        %345 = vmatprep.subr.mxu0 0.0
        %346 = vmatpush1.msra.mxu0 0.0
        %347 = vmatprep.subr.mxu0 0.0
        %348 = vmatpush1.msra.mxu0 0.0
        %349 = vmatprep.subr.mxu0 0.0
        %350 = vmatpush1.msra.mxu0 0.0
        %351 = vmatprep.subr.mxu0 0.0
        %352 = vmatpush1.msra.mxu0 0.0
        %353 = vmatprep.subr.mxu0 0.0
        %354 = vmatpush1.msra.mxu0 0.0
        %355 = vmatprep.subr.mxu0 0.0
        %356 = vmatpush1.msra.mxu0 0.0
        %357 = vmatprep.subr.mxu0 0.0
        %358 = vmatpush1.msra.mxu0 0.0
        %359 = vmatprep.subr.mxu0 0.0
        %360 = vmatpush1.msra.mxu0 0.0
        %361 = vmatprep.subr.mxu0 0.0
        %362 = vmatpush1.msra.mxu0 0.0
        %363 = vmatprep.subr.mxu0 0.0
        %364 = vmatpush1.msra.mxu0 0.0
        %365 = vmatprep.subr.mxu0 0.0
        %366 = vmatpush1.msra.mxu0 0.0
        %367 = vmatprep.subr.mxu0 0.0
        %368 = vmatpush1.msra.mxu0 0.0
        %369 = vmatprep.subr.mxu0 0.0
        %370 = vmatpush1.msra.mxu0 0.0
        %371 = vmatprep.subr.mxu0 0.0
        %372 = vmatpush1.msra.mxu0 0.0
        %373 = vmatprep.subr.mxu0 0.0
        %374 = vmatpush1.msra.mxu0 0.0
        %375 = vmatprep.subr.mxu0 0.0
        %376 = vmatpush1.msra.mxu0 0.0
        %377 = vmatprep.subr.mxu0 0.0
        %378 = vmatpush1.msra.mxu0 0.0
        %379 = vmatprep.subr.mxu0 0.0
        %380 = vmatpush1.msra.mxu0 0.0
        %381 = vmatprep.subr.mxu0 0.0
        %382 = vmatpush1.msra.mxu0 0.0
        %383 = vmatprep.subr.mxu0 0.0
        %384 = vmatpush1.msra.mxu0 0.0
        %385 = vmatprep.subr.mxu0 0.0
        %386 = vmatpush1.msra.mxu0 0.0
        %387 = vmatprep.subr.mxu0 0.0
        %388 = vmatpush1.msra.mxu0 0.0
        %389 = vmatprep.subr.mxu0 0.0
        %390 = vmatpush1.msra.mxu0 0.0
        %391 = vmatprep.subr.mxu0 0.0
        %392 = vmatpush1.msra.mxu0 0.0
        %393 = vmatprep.subr.mxu0 0.0
        %394 = vmatpush1.msra.mxu0 0.0
        %395 = vmatprep.subr.mxu0 0.0
        %396 = vmatpush1.msra.mxu0 0.0
        %397 = vmatprep.subr.mxu0 0.0
        %398 = vmatpush1.msra.mxu0 0.0
        %399 = vmatprep.mubr.f32.mxu0 0.0
        %v400 = vand.u32 %v229, 4294901760
        %401 = vmatmul.mubr.f32.gmra.mrb[0].mxu0 %v400
        %v402 = vpop.f32.mrb[0].mxu0
        %v403 = vadd.f32 %v312, %v402
        %v404 = vpop.f32.mrb[0].mxu0
        %405 = vmatprep.mubr.f32.mxu0 0.0
        %v406 = vand.u32 %v232, 4294901760
        %407 = vmatmul.mubr.f32.gmra.mrb[0].mxu0 %v406
        %v408 = vpop.f32.mrb[0].mxu0
        %v409 = vadd.f32 %v322, %v408
        %v410 = vpop.f32.mrb[0].mxu0
        %411 = vdwg.mxu0
        %412 = vmatprep.subr.mxu0 0.0
        %v413 = vand.u32 %v223, 4294901760
        %v414 = vsub.f32 %v223, %v413
        %415 = vmatpush1.msra.mxu0 %v414
        %416 = vmatprep.subr.mxu0 0.0
        %v417 = vand.u32 %v236, 4294901760
        %v418 = vsub.f32 %v236, %v417
        %419 = vmatpush1.msra.mxu0 %v418
        %420 = vmatprep.subr.mxu0 0.0
        %421 = vmatpush1.msra.mxu0 0.0
        %422 = vmatprep.subr.mxu0 0.0
        %423 = vmatpush1.msra.mxu0 0.0
        %424 = vmatprep.subr.mxu0 0.0
        %425 = vmatpush1.msra.mxu0 0.0
        %426 = vmatprep.subr.mxu0 0.0
        %427 = vmatpush1.msra.mxu0 0.0
        %428 = vmatprep.subr.mxu0 0.0
        %429 = vmatpush1.msra.mxu0 0.0
        %430 = vmatprep.subr.mxu0 0.0
        %431 = vmatpush1.msra.mxu0 0.0
        %432 = vmatprep.subr.mxu0 0.0
        %433 = vmatpush1.msra.mxu0 0.0
        %434 = vmatprep.subr.mxu0 0.0
        %435 = vmatpush1.msra.mxu0 0.0
        %436 = vmatprep.subr.mxu0 0.0
        %437 = vmatpush1.msra.mxu0 0.0
        %438 = vmatprep.subr.mxu0 0.0
        %439 = vmatpush1.msra.mxu0 0.0
        %440 = vmatprep.subr.mxu0 0.0
        %441 = vmatpush1.msra.mxu0 0.0
        %442 = vmatprep.subr.mxu0 0.0
        %443 = vmatpush1.msra.mxu0 0.0
        %444 = vmatprep.subr.mxu0 0.0
        %445 = vmatpush1.msra.mxu0 0.0
        %446 = vmatprep.subr.mxu0 0.0
        %447 = vmatpush1.msra.mxu0 0.0
        %448 = vmatprep.subr.mxu0 0.0
        %449 = vmatpush1.msra.mxu0 0.0
        %450 = vmatprep.subr.mxu0 0.0
        %451 = vmatpush1.msra.mxu0 0.0
        %452 = vmatprep.subr.mxu0 0.0
        %453 = vmatpush1.msra.mxu0 0.0
        %454 = vmatprep.subr.mxu0 0.0
        %455 = vmatpush1.msra.mxu0 0.0
        %456 = vmatprep.subr.mxu0 0.0
        %457 = vmatpush1.msra.mxu0 0.0
        %458 = vmatprep.subr.mxu0 0.0
        %459 = vmatpush1.msra.mxu0 0.0
        %460 = vmatprep.subr.mxu0 0.0
        %461 = vmatpush1.msra.mxu0 0.0
        %462 = vmatprep.subr.mxu0 0.0
        %463 = vmatpush1.msra.mxu0 0.0
        %464 = vmatprep.subr.mxu0 0.0
        %465 = vmatpush1.msra.mxu0 0.0
        %466 = vmatprep.subr.mxu0 0.0
        %467 = vmatpush1.msra.mxu0 0.0
        %468 = vmatprep.subr.mxu0 0.0
        %469 = vmatpush1.msra.mxu0 0.0
        %470 = vmatprep.subr.mxu0 0.0
        %471 = vmatpush1.msra.mxu0 0.0
        %472 = vmatprep.subr.mxu0 0.0
        %473 = vmatpush1.msra.mxu0 0.0
        %474 = vmatprep.subr.mxu0 0.0
        %475 = vmatpush1.msra.mxu0 0.0
        %476 = vmatprep.subr.mxu0 0.0
        %477 = vmatpush1.msra.mxu0 0.0
        %478 = vmatprep.subr.mxu0 0.0
        %479 = vmatpush1.msra.mxu0 0.0
        %480 = vmatprep.mubr.f32.mxu0 0.0
        %v481 = vand.u32 %v229, 4294901760
        %v482 = vsub.f32 %v229, %v481
        %483 = vmatmul.mubr.f32.gmra.mrb[0].mxu0 %v482
        %v484 = vpop.f32.mrb[0].mxu0
        %v485 = vadd.f32 %v403, %v484
        %v486 = vpop.f32.mrb[0].mxu0
        %487 = vmatprep.mubr.f32.mxu0 0.0
        %v488 = vand.u32 %v232, 4294901760
        %v489 = vsub.f32 %v232, %v488
        %490 = vmatmul.mubr.f32.gmra.mrb[0].mxu0 %v489
        %v491 = vpop.f32.mrb[0].mxu0
        %v492 = vadd.f32 %v409, %v491
        %v493 = vpop.f32.mrb[0].mxu0
        %494 = vdwg.mxu0
        %495 = vmatprep.subr.mxu0 0.0
        %v496 = vand.u32 %v223, 4294901760
        %497 = vmatpush1.msra.mxu0 %v496
        %498 = vmatprep.subr.mxu0 0.0
        %v499 = vand.u32 %v236, 4294901760
        %500 = vmatpush1.msra.mxu0 %v499
        %501 = vmatprep.subr.mxu0 0.0
        %502 = vmatpush1.msra.mxu0 0.0
        %503 = vmatprep.subr.mxu0 0.0
        %504 = vmatpush1.msra.mxu0 0.0
        %505 = vmatprep.subr.mxu0 0.0
        %506 = vmatpush1.msra.mxu0 0.0
        %507 = vmatprep.subr.mxu0 0.0
        %508 = vmatpush1.msra.mxu0 0.0
        %509 = vmatprep.subr.mxu0 0.0
        %510 = vmatpush1.msra.mxu0 0.0
        %511 = vmatprep.subr.mxu0 0.0
        %512 = vmatpush1.msra.mxu0 0.0
        %513 = vmatprep.subr.mxu0 0.0
        %514 = vmatpush1.msra.mxu0 0.0
        %515 = vmatprep.subr.mxu0 0.0
        %516 = vmatpush1.msra.mxu0 0.0
        %517 = vmatprep.subr.mxu0 0.0
        %518 = vmatpush1.msra.mxu0 0.0
        %519 = vmatprep.subr.mxu0 0.0
        %520 = vmatpush1.msra.mxu0 0.0
        %521 = vmatprep.subr.mxu0 0.0
        %522 = vmatpush1.msra.mxu0 0.0
        %523 = vmatprep.subr.mxu0 0.0
        %524 = vmatpush1.msra.mxu0 0.0
        %525 = vmatprep.subr.mxu0 0.0
        %526 = vmatpush1.msra.mxu0 0.0
        %527 = vmatprep.subr.mxu0 0.0
        %528 = vmatpush1.msra.mxu0 0.0
        %529 = vmatprep.subr.mxu0 0.0
        %530 = vmatpush1.msra.mxu0 0.0
        %531 = vmatprep.subr.mxu0 0.0
        %532 = vmatpush1.msra.mxu0 0.0
        %533 = vmatprep.subr.mxu0 0.0
        %534 = vmatpush1.msra.mxu0 0.0
        %535 = vmatprep.subr.mxu0 0.0
        %536 = vmatpush1.msra.mxu0 0.0
        %537 = vmatprep.subr.mxu0 0.0
        %538 = vmatpush1.msra.mxu0 0.0
        %539 = vmatprep.subr.mxu0 0.0
        %540 = vmatpush1.msra.mxu0 0.0
        %541 = vmatprep.subr.mxu0 0.0
        %542 = vmatpush1.msra.mxu0 0.0
        %543 = vmatprep.subr.mxu0 0.0
        %544 = vmatpush1.msra.mxu0 0.0
        %545 = vmatprep.subr.mxu0 0.0
        %546 = vmatpush1.msra.mxu0 0.0
        %547 = vmatprep.subr.mxu0 0.0
        %548 = vmatpush1.msra.mxu0 0.0
        %549 = vmatprep.subr.mxu0 0.0
        %550 = vmatpush1.msra.mxu0 0.0
        %551 = vmatprep.subr.mxu0 0.0
        %552 = vmatpush1.msra.mxu0 0.0
        %553 = vmatprep.subr.mxu0 0.0
        %554 = vmatpush1.msra.mxu0 0.0
        %555 = vmatprep.subr.mxu0 0.0
        %556 = vmatpush1.msra.mxu0 0.0
        %557 = vmatprep.subr.mxu0 0.0
        %558 = vmatpush1.msra.mxu0 0.0
        %559 = vmatprep.subr.mxu0 0.0
        %560 = vmatpush1.msra.mxu0 0.0
        %561 = vmatprep.mubr.f32.mxu0 0.0
        %v562 = vand.u32 %v229, 4294901760
        %v563 = vsub.f32 %v229, %v562
        %v564 = vand.u32 %v563, 4294901760
        %565 = vmatmul.mubr.f32.gmra.mrb[0].mxu0 %v564
        %v566 = vpop.f32.mrb[0].mxu0
        %v567 = vadd.f32 %v485, %v566
        %v568 = vpop.f32.mrb[0].mxu0
        %569 = vmatprep.mubr.f32.mxu0 0.0
        %v570 = vand.u32 %v232, 4294901760
        %v571 = vsub.f32 %v232, %v570
        %v572 = vand.u32 %v571, 4294901760
        %573 = vmatmul.mubr.f32.gmra.mrb[0].mxu0 %v572
        %v574 = vpop.f32.mrb[0].mxu0
        %v575 = vadd.f32 %v492, %v574
        %v576 = vpop.f32.mrb[0].mxu0
        %577 = vdwg.mxu0
        %578 = vmatprep.subr.mxu0 0.0
        %v579 = vand.u32 %v223, 4294901760
        %v580 = vsub.f32 %v223, %v579
        %v581 = vand.u32 %v580, 4294901760
        %582 = vmatpush1.msra.mxu0 %v581
        %583 = vmatprep.subr.mxu0 0.0
        %v584 = vand.u32 %v236, 4294901760
        %v585 = vsub.f32 %v236, %v584
        %v586 = vand.u32 %v585, 4294901760
        %587 = vmatpush1.msra.mxu0 %v586
        %588 = vmatprep.subr.mxu0 0.0
        %589 = vmatpush1.msra.mxu0 0.0
        %590 = vmatprep.subr.mxu0 0.0
        %591 = vmatpush1.msra.mxu0 0.0
        %592 = vmatprep.subr.mxu0 0.0
        %593 = vmatpush1.msra.mxu0 0.0
        %594 = vmatprep.subr.mxu0 0.0
        %595 = vmatpush1.msra.mxu0 0.0
        %596 = vmatprep.subr.mxu0 0.0
        %597 = vmatpush1.msra.mxu0 0.0
        %598 = vmatprep.subr.mxu0 0.0
        %599 = vmatpush1.msra.mxu0 0.0
        %600 = vmatprep.subr.mxu0 0.0
        %601 = vmatpush1.msra.mxu0 0.0
        %602 = vmatprep.subr.mxu0 0.0
        %603 = vmatpush1.msra.mxu0 0.0
        %604 = vmatprep.subr.mxu0 0.0
        %605 = vmatpush1.msra.mxu0 0.0
        %606 = vmatprep.subr.mxu0 0.0
        %607 = vmatpush1.msra.mxu0 0.0
        %608 = vmatprep.subr.mxu0 0.0
        %609 = vmatpush1.msra.mxu0 0.0
        %610 = vmatprep.subr.mxu0 0.0
        %611 = vmatpush1.msra.mxu0 0.0
        %612 = vmatprep.subr.mxu0 0.0
        %613 = vmatpush1.msra.mxu0 0.0
        %614 = vmatprep.subr.mxu0 0.0
        %615 = vmatpush1.msra.mxu0 0.0
        %616 = vmatprep.subr.mxu0 0.0
        %617 = vmatpush1.msra.mxu0 0.0
        %618 = vmatprep.subr.mxu0 0.0
        %619 = vmatpush1.msra.mxu0 0.0
        %620 = vmatprep.subr.mxu0 0.0
        %621 = vmatpush1.msra.mxu0 0.0
        %622 = vmatprep.subr.mxu0 0.0
        %623 = vmatpush1.msra.mxu0 0.0
        %624 = vmatprep.subr.mxu0 0.0
        %625 = vmatpush1.msra.mxu0 0.0
        %626 = vmatprep.subr.mxu0 0.0
        %627 = vmatpush1.msra.mxu0 0.0
        %628 = vmatprep.subr.mxu0 0.0
        %629 = vmatpush1.msra.mxu0 0.0
        %630 = vmatprep.subr.mxu0 0.0
        %631 = vmatpush1.msra.mxu0 0.0
        %632 = vmatprep.subr.mxu0 0.0
        %633 = vmatpush1.msra.mxu0 0.0
        %634 = vmatprep.subr.mxu0 0.0
        %635 = vmatpush1.msra.mxu0 0.0
        %636 = vmatprep.subr.mxu0 0.0
        %637 = vmatpush1.msra.mxu0 0.0
        %638 = vmatprep.subr.mxu0 0.0
        %639 = vmatpush1.msra.mxu0 0.0
        %640 = vmatprep.subr.mxu0 0.0
        %641 = vmatpush1.msra.mxu0 0.0
        %642 = vmatprep.subr.mxu0 0.0
        %643 = vmatpush1.msra.mxu0 0.0
        %644 = vmatprep.subr.mxu0 0.0
        %645 = vmatpush1.msra.mxu0 0.0
        %646 = vmatprep.subr.mxu0 0.0
        %647 = vmatpush1.msra.mxu0 0.0
        %648 = vmatprep.mubr.f32.mxu0 0.0
        %v649 = vand.u32 %v229, 4294901760
        %650 = vmatmul.mubr.f32.gmra.mrb[0].mxu0 %v649
        %v651 = vpop.f32.mrb[0].mxu0
        %v652 = vadd.f32 %v567, %v651
        %v653 = vpop.f32.mrb[0].mxu0
        %654 = vmatprep.mubr.f32.mxu0 0.0
        %v655 = vand.u32 %v232, 4294901760
        %656 = vmatmul.mubr.f32.gmra.mrb[0].mxu0 %v655
        %v657 = vpop.f32.mrb[0].mxu0
        %v658 = vadd.f32 %v575, %v657
        %v659 = vpop.f32.mrb[0].mxu0
        %660 = vdwg.mxu0
        %661 = vmatprep.subr.mxu0 0.0
        %v662 = vand.u32 %v223, 4294901760
        %663 = vmatpush1.msra.mxu0 %v662
        %664 = vmatprep.subr.mxu0 0.0
        %v665 = vand.u32 %v236, 4294901760
        %666 = vmatpush1.msra.mxu0 %v665
        %667 = vmatprep.subr.mxu0 0.0
        %668 = vmatpush1.msra.mxu0 0.0
        %669 = vmatprep.subr.mxu0 0.0
        %670 = vmatpush1.msra.mxu0 0.0
        %671 = vmatprep.subr.mxu0 0.0
        %672 = vmatpush1.msra.mxu0 0.0
        %673 = vmatprep.subr.mxu0 0.0
        %674 = vmatpush1.msra.mxu0 0.0
        %675 = vmatprep.subr.mxu0 0.0
        %676 = vmatpush1.msra.mxu0 0.0
        %677 = vmatprep.subr.mxu0 0.0
        %678 = vmatpush1.msra.mxu0 0.0
        %679 = vmatprep.subr.mxu0 0.0
        %680 = vmatpush1.msra.mxu0 0.0
        %681 = vmatprep.subr.mxu0 0.0
        %682 = vmatpush1.msra.mxu0 0.0
        %683 = vmatprep.subr.mxu0 0.0
        %684 = vmatpush1.msra.mxu0 0.0
        %685 = vmatprep.subr.mxu0 0.0
        %686 = vmatpush1.msra.mxu0 0.0
        %687 = vmatprep.subr.mxu0 0.0
        %688 = vmatpush1.msra.mxu0 0.0
        %689 = vmatprep.subr.mxu0 0.0
        %690 = vmatpush1.msra.mxu0 0.0
        %691 = vmatprep.subr.mxu0 0.0
        %692 = vmatpush1.msra.mxu0 0.0
        %693 = vmatprep.subr.mxu0 0.0
        %694 = vmatpush1.msra.mxu0 0.0
        %695 = vmatprep.subr.mxu0 0.0
        %696 = vmatpush1.msra.mxu0 0.0
        %697 = vmatprep.subr.mxu0 0.0
        %698 = vmatpush1.msra.mxu0 0.0
        %699 = vmatprep.subr.mxu0 0.0
        %700 = vmatpush1.msra.mxu0 0.0
        %701 = vmatprep.subr.mxu0 0.0
        %702 = vmatpush1.msra.mxu0 0.0
        %703 = vmatprep.subr.mxu0 0.0
        %704 = vmatpush1.msra.mxu0 0.0
        %705 = vmatprep.subr.mxu0 0.0
        %706 = vmatpush1.msra.mxu0 0.0
        %707 = vmatprep.subr.mxu0 0.0
        %708 = vmatpush1.msra.mxu0 0.0
        %709 = vmatprep.subr.mxu0 0.0
        %710 = vmatpush1.msra.mxu0 0.0
        %711 = vmatprep.subr.mxu0 0.0
        %712 = vmatpush1.msra.mxu0 0.0
        %713 = vmatprep.subr.mxu0 0.0
        %714 = vmatpush1.msra.mxu0 0.0
        %715 = vmatprep.subr.mxu0 0.0
        %716 = vmatpush1.msra.mxu0 0.0
        %717 = vmatprep.subr.mxu0 0.0
        %718 = vmatpush1.msra.mxu0 0.0
        %719 = vmatprep.subr.mxu0 0.0
        %720 = vmatpush1.msra.mxu0 0.0
        %721 = vmatprep.subr.mxu0 0.0
        %722 = vmatpush1.msra.mxu0 0.0
        %723 = vmatprep.subr.mxu0 0.0
        %724 = vmatpush1.msra.mxu0 0.0
        %725 = vmatprep.subr.mxu0 0.0
        %726 = vmatpush1.msra.mxu0 0.0
        %727 = vmatprep.mubr.f32.mxu0 0.0
        %v728 = vand.u32 %v229, 4294901760
        %729 = vmatmul.mubr.f32.gmra.mrb[0].mxu0 %v728
        %v730 = vpop.f32.mrb[0].mxu0
        %v731 = vadd.f32 %v652, %v730
        %v732 = vpop.f32.mrb[0].mxu0
        %733 = vmatprep.mubr.f32.mxu0 0.0
        %v734 = vand.u32 %v232, 4294901760
        %735 = vmatmul.mubr.f32.gmra.mrb[0].mxu0 %v734
        %v736 = vpop.f32.mrb[0].mxu0
        %v737 = vadd.f32 %v658, %v736
        %v738 = vpop.f32.mrb[0].mxu0
        %739 = vdwg.mxu0
        %v740 = vmul.f32 %v731, %v731
        %v741 = vrot.slane %v740, 4
        %v742 = vadd.f32 %v740, %v741
        %v743 = vrot.slane %v742, 2
        %v744 = vadd.f32 %v742, %v743
        %v745 = vrot.slane %v744, 1
        %v746 = vadd.f32 %v744, %v745
        %v747 = vsel %vm234, %v737, %v746
        %v748 = vld [vmem:[%s3] sm:$0xff]
        %v749 = vld [vmem:[%s3 + $0x8] sm:$0xff]
        %v750 = vld [vmem:[%s3 + $0x10] sm:$0xff]
        %v751 = vld [vmem:[%s3 + $0x18] sm:$0xff]
        %v752 = vld [vmem:[%s3 + $0x20] sm:$0xff]
        %v753 = vld [vmem:[%s3 + $0x28] sm:$0xff]
        %v754 = vld [vmem:[%s3 + $0x30] sm:$0xff]
        %v755 = vld [vmem:[%s3 + $0x38] sm:$0xff]
        %v756 = vld [vmem:[%s3 + $0x40] sm:$0xff]
        %v757 = vld [vmem:[%s3 + $0x48] sm:$0xff]
        %v758 = vld [vmem:[%s3 + $0x50] sm:$0xff]
        %v759 = vld [vmem:[%s3 + $0x58] sm:$0xff]
        %v760 = vld [vmem:[%s3 + $0x60] sm:$0xff]
        %v761 = vld [vmem:[%s3 + $0x68] sm:$0xff]
        %v762 = vld [vmem:[%s3 + $0x70] sm:$0xff]
        %v763 = vld [vmem:[%s3 + $0x78] sm:$0xff]
        %764 = vmatprep.subr.mxu0 0.0
        %v765 = vand.u32 %v748, 4294901760
        %766 = vmatpush1.msra.mxu0 %v765
        %767 = vmatprep.subr.mxu0 0.0
        %v768 = vand.u32 %v749, 4294901760
        %769 = vmatpush1.msra.mxu0 %v768
        %770 = vmatprep.subr.mxu0 0.0
        %v771 = vand.u32 %v750, 4294901760
        %772 = vmatpush1.msra.mxu0 %v771
        %773 = vmatprep.subr.mxu0 0.0
        %v774 = vand.u32 %v751, 4294901760
        %775 = vmatpush1.msra.mxu0 %v774
        %776 = vmatprep.subr.mxu0 0.0
        %v777 = vand.u32 %v752, 4294901760
        %778 = vmatpush1.msra.mxu0 %v777
        %779 = vmatprep.subr.mxu0 0.0
        %v780 = vand.u32 %v753, 4294901760
        %781 = vmatpush1.msra.mxu0 %v780
        %782 = vmatprep.subr.mxu0 0.0
        %v783 = vand.u32 %v754, 4294901760
        %784 = vmatpush1.msra.mxu0 %v783
        %785 = vmatprep.subr.mxu0 0.0
        %v786 = vand.u32 %v755, 4294901760
        %787 = vmatpush1.msra.mxu0 %v786
        %788 = vmatprep.subr.mxu0 0.0
        %v789 = vand.u32 %v756, 4294901760
        %790 = vmatpush1.msra.mxu0 %v789
        %791 = vmatprep.subr.mxu0 0.0
        %v792 = vand.u32 %v757, 4294901760
        %793 = vmatpush1.msra.mxu0 %v792
        %794 = vmatprep.subr.mxu0 0.0
        %v795 = vand.u32 %v758, 4294901760
        %796 = vmatpush1.msra.mxu0 %v795
        %797 = vmatprep.subr.mxu0 0.0
        %v798 = vand.u32 %v759, 4294901760
        %799 = vmatpush1.msra.mxu0 %v798
        %800 = vmatprep.subr.mxu0 0.0
        %v801 = vand.u32 %v760, 4294901760
        %802 = vmatpush1.msra.mxu0 %v801
        %803 = vmatprep.subr.mxu0 0.0
        %v804 = vand.u32 %v761, 4294901760
        %805 = vmatpush1.msra.mxu0 %v804
        %806 = vmatprep.subr.mxu0 0.0
        %v807 = vand.u32 %v762, 4294901760
        %808 = vmatpush1.msra.mxu0 %v807
        %809 = vmatprep.subr.mxu0 0.0
        %v810 = vand.u32 %v763, 4294901760
        %811 = vmatpush1.msra.mxu0 %v810
        %812 = vmatprep.subr.mxu0 0.0
        %813 = vmatpush1.msra.mxu0 0.0
        %814 = vmatprep.subr.mxu0 0.0
        %815 = vmatpush1.msra.mxu0 0.0
        %816 = vmatprep.subr.mxu0 0.0
        %817 = vmatpush1.msra.mxu0 0.0
        %818 = vmatprep.subr.mxu0 0.0
        %819 = vmatpush1.msra.mxu0 0.0
        %820 = vmatprep.subr.mxu0 0.0
        %821 = vmatpush1.msra.mxu0 0.0
        %822 = vmatprep.subr.mxu0 0.0
        %823 = vmatpush1.msra.mxu0 0.0
        %824 = vmatprep.subr.mxu0 0.0
        %825 = vmatpush1.msra.mxu0 0.0
        %826 = vmatprep.subr.mxu0 0.0
        %827 = vmatpush1.msra.mxu0 0.0
        %828 = vmatprep.subr.mxu0 0.0
        %829 = vmatpush1.msra.mxu0 0.0
        %830 = vmatprep.subr.mxu0 0.0
        %831 = vmatpush1.msra.mxu0 0.0
        %832 = vmatprep.subr.mxu0 0.0
        %833 = vmatpush1.msra.mxu0 0.0
        %834 = vmatprep.subr.mxu0 0.0
        %835 = vmatpush1.msra.mxu0 0.0
        %836 = vmatprep.subr.mxu0 0.0
        %837 = vmatpush1.msra.mxu0 0.0
        %838 = vmatprep.subr.mxu0 0.0
        %839 = vmatpush1.msra.mxu0 0.0
        %840 = vmatprep.subr.mxu0 0.0
        %841 = vmatpush1.msra.mxu0 0.0
        %842 = vmatprep.subr.mxu0 0.0
        %843 = vmatpush1.msra.mxu0 0.0
        %844 = vmatprep.mubr.f32.mxu0 0.0
        %v845 = vand.u32 %v747, 4294901760
        %v846 = vsub.f32 %v747, %v845
        %v847 = vand.u32 %v846, 4294901760
        %v848 = vsub.f32 %v846, %v847
        %v849 = vand.u32 %v848, 4294901760
        %850 = vmatmul.mubr.f32.gmra.mrb[0].mxu0 %v849
        %v851 = vpop.f32.mrb[0].mxu0
        %v852 = vadd.f32 0.0, %v851
        %v853 = vpop.f32.mrb[0].mxu0
        %854 = vdwg.mxu0
        %855 = vmatprep.subr.mxu0 0.0
        %v856 = vand.u32 %v748, 4294901760
        %v857 = vsub.f32 %v748, %v856
        %v858 = vand.u32 %v857, 4294901760
        %v859 = vsub.f32 %v857, %v858
        %v860 = vand.u32 %v859, 4294901760
        %861 = vmatpush1.msra.mxu0 %v860
        %862 = vmatprep.subr.mxu0 0.0
        %v863 = vand.u32 %v749, 4294901760
        %v864 = vsub.f32 %v749, %v863
        %v865 = vand.u32 %v864, 4294901760
        %v866 = vsub.f32 %v864, %v865
        %v867 = vand.u32 %v866, 4294901760
        %868 = vmatpush1.msra.mxu0 %v867
        %869 = vmatprep.subr.mxu0 0.0
        %v870 = vand.u32 %v750, 4294901760
        %v871 = vsub.f32 %v750, %v870
        %v872 = vand.u32 %v871, 4294901760
        %v873 = vsub.f32 %v871, %v872
        %v874 = vand.u32 %v873, 4294901760
        %875 = vmatpush1.msra.mxu0 %v874
        %876 = vmatprep.subr.mxu0 0.0
        %v877 = vand.u32 %v751, 4294901760
        %v878 = vsub.f32 %v751, %v877
        %v879 = vand.u32 %v878, 4294901760
        %v880 = vsub.f32 %v878, %v879
        %v881 = vand.u32 %v880, 4294901760
        %882 = vmatpush1.msra.mxu0 %v881
        %883 = vmatprep.subr.mxu0 0.0
        %v884 = vand.u32 %v752, 4294901760
        %v885 = vsub.f32 %v752, %v884
        %v886 = vand.u32 %v885, 4294901760
        %v887 = vsub.f32 %v885, %v886
        %v888 = vand.u32 %v887, 4294901760
        %889 = vmatpush1.msra.mxu0 %v888
        %890 = vmatprep.subr.mxu0 0.0
        %v891 = vand.u32 %v753, 4294901760
        %v892 = vsub.f32 %v753, %v891
        %v893 = vand.u32 %v892, 4294901760
        %v894 = vsub.f32 %v892, %v893
        %v895 = vand.u32 %v894, 4294901760
        %896 = vmatpush1.msra.mxu0 %v895
        %897 = vmatprep.subr.mxu0 0.0
        %v898 = vand.u32 %v754, 4294901760
        %v899 = vsub.f32 %v754, %v898
        %v900 = vand.u32 %v899, 4294901760
        %v901 = vsub.f32 %v899, %v900
        %v902 = vand.u32 %v901, 4294901760
        %903 = vmatpush1.msra.mxu0 %v902
        %904 = vmatprep.subr.mxu0 0.0
        %v905 = vand.u32 %v755, 4294901760
        %v906 = vsub.f32 %v755, %v905
        %v907 = vand.u32 %v906, 4294901760
        %v908 = vsub.f32 %v906, %v907
        %v909 = vand.u32 %v908, 4294901760
        %910 = vmatpush1.msra.mxu0 %v909
        %911 = vmatprep.subr.mxu0 0.0
        %v912 = vand.u32 %v756, 4294901760
        %v913 = vsub.f32 %v756, %v912
        %v914 = vand.u32 %v913, 4294901760
        %v915 = vsub.f32 %v913, %v914
        %v916 = vand.u32 %v915, 4294901760
        %917 = vmatpush1.msra.mxu0 %v916
        %918 = vmatprep.subr.mxu0 0.0
        %v919 = vand.u32 %v757, 4294901760
        %v920 = vsub.f32 %v757, %v919
        %v921 = vand.u32 %v920, 4294901760
        %v922 = vsub.f32 %v920, %v921
        %v923 = vand.u32 %v922, 4294901760
        %924 = vmatpush1.msra.mxu0 %v923
        %925 = vmatprep.subr.mxu0 0.0
        %v926 = vand.u32 %v758, 4294901760
        %v927 = vsub.f32 %v758, %v926
        %v928 = vand.u32 %v927, 4294901760
        %v929 = vsub.f32 %v927, %v928
        %v930 = vand.u32 %v929, 4294901760
        %931 = vmatpush1.msra.mxu0 %v930
        %932 = vmatprep.subr.mxu0 0.0
        %v933 = vand.u32 %v759, 4294901760
        %v934 = vsub.f32 %v759, %v933
        %v935 = vand.u32 %v934, 4294901760
        %v936 = vsub.f32 %v934, %v935
        %v937 = vand.u32 %v936, 4294901760
        %938 = vmatpush1.msra.mxu0 %v937
        %939 = vmatprep.subr.mxu0 0.0
        %v940 = vand.u32 %v760, 4294901760
        %v941 = vsub.f32 %v760, %v940
        %v942 = vand.u32 %v941, 4294901760
        %v943 = vsub.f32 %v941, %v942
        %v944 = vand.u32 %v943, 4294901760
        %945 = vmatpush1.msra.mxu0 %v944
        %946 = vmatprep.subr.mxu0 0.0
        %v947 = vand.u32 %v761, 4294901760
        %v948 = vsub.f32 %v761, %v947
        %v949 = vand.u32 %v948, 4294901760
        %v950 = vsub.f32 %v948, %v949
        %v951 = vand.u32 %v950, 4294901760
        %952 = vmatpush1.msra.mxu0 %v951
        %953 = vmatprep.subr.mxu0 0.0
        %v954 = vand.u32 %v762, 4294901760
        %v955 = vsub.f32 %v762, %v954
        %v956 = vand.u32 %v955, 4294901760
        %v957 = vsub.f32 %v955, %v956
        %v958 = vand.u32 %v957, 4294901760
        %959 = vmatpush1.msra.mxu0 %v958
        %960 = vmatprep.subr.mxu0 0.0
        %v961 = vand.u32 %v763, 4294901760
        %v962 = vsub.f32 %v763, %v961
        %v963 = vand.u32 %v962, 4294901760
        %v964 = vsub.f32 %v962, %v963
        %v965 = vand.u32 %v964, 4294901760
        %966 = vmatpush1.msra.mxu0 %v965
        %967 = vmatprep.subr.mxu0 0.0
        %968 = vmatpush1.msra.mxu0 0.0
        %969 = vmatprep.subr.mxu0 0.0
        %970 = vmatpush1.msra.mxu0 0.0
        %971 = vmatprep.subr.mxu0 0.0
        %972 = vmatpush1.msra.mxu0 0.0
        %973 = vmatprep.subr.mxu0 0.0
        %974 = vmatpush1.msra.mxu0 0.0
        %975 = vmatprep.subr.mxu0 0.0
        %976 = vmatpush1.msra.mxu0 0.0
        %977 = vmatprep.subr.mxu0 0.0
        %978 = vmatpush1.msra.mxu0 0.0
        %979 = vmatprep.subr.mxu0 0.0
        %980 = vmatpush1.msra.mxu0 0.0
        %981 = vmatprep.subr.mxu0 0.0
        %982 = vmatpush1.msra.mxu0 0.0
        %983 = vmatprep.subr.mxu0 0.0
        %984 = vmatpush1.msra.mxu0 0.0
        %985 = vmatprep.subr.mxu0 0.0
        %986 = vmatpush1.msra.mxu0 0.0
        %987 = vmatprep.subr.mxu0 0.0
        %988 = vmatpush1.msra.mxu0 0.0
        %989 = vmatprep.subr.mxu0 0.0
        %990 = vmatpush1.msra.mxu0 0.0
        %991 = vmatprep.subr.mxu0 0.0
        %992 = vmatpush1.msra.mxu0 0.0
        %993 = vmatprep.subr.mxu0 0.0
        %994 = vmatpush1.msra.mxu0 0.0
        %995 = vmatprep.subr.mxu0 0.0
        %996 = vmatpush1.msra.mxu0 0.0
        %997 = vmatprep.subr.mxu0 0.0
        %998 = vmatpush1.msra.mxu0 0.0
        %999 = vmatprep.mubr.f32.mxu0 0.0
        %v1000 = vand.u32 %v747, 4294901760
        %1001 = vmatmul.mubr.f32.gmra.mrb[0].mxu0 %v1000
        %v1002 = vpop.f32.mrb[0].mxu0
        %v1003 = vadd.f32 %v852, %v1002
        %v1004 = vpop.f32.mrb[0].mxu0
        %1005 = vdwg.mxu0
        %1006 = vmatprep.subr.mxu0 0.0
        %v1007 = vand.u32 %v748, 4294901760
        %v1008 = vsub.f32 %v748, %v1007
        %1009 = vmatpush1.msra.mxu0 %v1008
        %1010 = vmatprep.subr.mxu0 0.0
        %v1011 = vand.u32 %v749, 4294901760
        %v1012 = vsub.f32 %v749, %v1011
        %1013 = vmatpush1.msra.mxu0 %v1012
        %1014 = vmatprep.subr.mxu0 0.0
        %v1015 = vand.u32 %v750, 4294901760
        %v1016 = vsub.f32 %v750, %v1015
        %1017 = vmatpush1.msra.mxu0 %v1016
        %1018 = vmatprep.subr.mxu0 0.0
        %v1019 = vand.u32 %v751, 4294901760
        %v1020 = vsub.f32 %v751, %v1019
        %1021 = vmatpush1.msra.mxu0 %v1020
        %1022 = vmatprep.subr.mxu0 0.0
        %v1023 = vand.u32 %v752, 4294901760
        %v1024 = vsub.f32 %v752, %v1023
        %1025 = vmatpush1.msra.mxu0 %v1024
        %1026 = vmatprep.subr.mxu0 0.0
        %v1027 = vand.u32 %v753, 4294901760
        %v1028 = vsub.f32 %v753, %v1027
        %1029 = vmatpush1.msra.mxu0 %v1028
        %1030 = vmatprep.subr.mxu0 0.0
        %v1031 = vand.u32 %v754, 4294901760
        %v1032 = vsub.f32 %v754, %v1031
        %1033 = vmatpush1.msra.mxu0 %v1032
        %1034 = vmatprep.subr.mxu0 0.0
        %v1035 = vand.u32 %v755, 4294901760
        %v1036 = vsub.f32 %v755, %v1035
        %1037 = vmatpush1.msra.mxu0 %v1036
        %1038 = vmatprep.subr.mxu0 0.0
        %v1039 = vand.u32 %v756, 4294901760
        %v1040 = vsub.f32 %v756, %v1039
        %1041 = vmatpush1.msra.mxu0 %v1040
        %1042 = vmatprep.subr.mxu0 0.0
        %v1043 = vand.u32 %v757, 4294901760
        %v1044 = vsub.f32 %v757, %v1043
        %1045 = vmatpush1.msra.mxu0 %v1044
        %1046 = vmatprep.subr.mxu0 0.0
        %v1047 = vand.u32 %v758, 4294901760
        %v1048 = vsub.f32 %v758, %v1047
        %1049 = vmatpush1.msra.mxu0 %v1048
        %1050 = vmatprep.subr.mxu0 0.0
        %v1051 = vand.u32 %v759, 4294901760
        %v1052 = vsub.f32 %v759, %v1051
        %1053 = vmatpush1.msra.mxu0 %v1052
        %1054 = vmatprep.subr.mxu0 0.0
        %v1055 = vand.u32 %v760, 4294901760
        %v1056 = vsub.f32 %v760, %v1055
        %1057 = vmatpush1.msra.mxu0 %v1056
        %1058 = vmatprep.subr.mxu0 0.0
        %v1059 = vand.u32 %v761, 4294901760
        %v1060 = vsub.f32 %v761, %v1059
        %1061 = vmatpush1.msra.mxu0 %v1060
        %1062 = vmatprep.subr.mxu0 0.0
        %v1063 = vand.u32 %v762, 4294901760
        %v1064 = vsub.f32 %v762, %v1063
        %1065 = vmatpush1.msra.mxu0 %v1064
        %1066 = vmatprep.subr.mxu0 0.0
        %v1067 = vand.u32 %v763, 4294901760
        %v1068 = vsub.f32 %v763, %v1067
        %1069 = vmatpush1.msra.mxu0 %v1068
        %1070 = vmatprep.subr.mxu0 0.0
        %1071 = vmatpush1.msra.mxu0 0.0
        %1072 = vmatprep.subr.mxu0 0.0
        %1073 = vmatpush1.msra.mxu0 0.0
        %1074 = vmatprep.subr.mxu0 0.0
        %1075 = vmatpush1.msra.mxu0 0.0
        %1076 = vmatprep.subr.mxu0 0.0
        %1077 = vmatpush1.msra.mxu0 0.0
        %1078 = vmatprep.subr.mxu0 0.0
        %1079 = vmatpush1.msra.mxu0 0.0
        %1080 = vmatprep.subr.mxu0 0.0
        %1081 = vmatpush1.msra.mxu0 0.0
        %1082 = vmatprep.subr.mxu0 0.0
        %1083 = vmatpush1.msra.mxu0 0.0
        %1084 = vmatprep.subr.mxu0 0.0
        %1085 = vmatpush1.msra.mxu0 0.0
        %1086 = vmatprep.subr.mxu0 0.0
        %1087 = vmatpush1.msra.mxu0 0.0
        %1088 = vmatprep.subr.mxu0 0.0
        %1089 = vmatpush1.msra.mxu0 0.0
        %1090 = vmatprep.subr.mxu0 0.0
        %1091 = vmatpush1.msra.mxu0 0.0
        %1092 = vmatprep.subr.mxu0 0.0
        %1093 = vmatpush1.msra.mxu0 0.0
        %1094 = vmatprep.subr.mxu0 0.0
        %1095 = vmatpush1.msra.mxu0 0.0
        %1096 = vmatprep.subr.mxu0 0.0
        %1097 = vmatpush1.msra.mxu0 0.0
        %1098 = vmatprep.subr.mxu0 0.0
        %1099 = vmatpush1.msra.mxu0 0.0
        %1100 = vmatprep.subr.mxu0 0.0
        %1101 = vmatpush1.msra.mxu0 0.0
        %1102 = vmatprep.mubr.f32.mxu0 0.0
        %v1103 = vand.u32 %v747, 4294901760
        %v1104 = vsub.f32 %v747, %v1103
        %1105 = vmatmul.mubr.f32.gmra.mrb[0].mxu0 %v1104
        %v1106 = vpop.f32.mrb[0].mxu0
        %v1107 = vadd.f32 %v1003, %v1106
        %v1108 = vpop.f32.mrb[0].mxu0
        %1109 = vdwg.mxu0
        %1110 = vmatprep.subr.mxu0 0.0
        %v1111 = vand.u32 %v748, 4294901760
        %1112 = vmatpush1.msra.mxu0 %v1111
        %1113 = vmatprep.subr.mxu0 0.0
        %v1114 = vand.u32 %v749, 4294901760
        %1115 = vmatpush1.msra.mxu0 %v1114
        %1116 = vmatprep.subr.mxu0 0.0
        %v1117 = vand.u32 %v750, 4294901760
        %1118 = vmatpush1.msra.mxu0 %v1117
        %1119 = vmatprep.subr.mxu0 0.0
        %v1120 = vand.u32 %v751, 4294901760
        %1121 = vmatpush1.msra.mxu0 %v1120
        %1122 = vmatprep.subr.mxu0 0.0
        %v1123 = vand.u32 %v752, 4294901760
        %1124 = vmatpush1.msra.mxu0 %v1123
        %1125 = vmatprep.subr.mxu0 0.0
        %v1126 = vand.u32 %v753, 4294901760
        %1127 = vmatpush1.msra.mxu0 %v1126
        %1128 = vmatprep.subr.mxu0 0.0
        %v1129 = vand.u32 %v754, 4294901760
        %1130 = vmatpush1.msra.mxu0 %v1129
        %1131 = vmatprep.subr.mxu0 0.0
        %v1132 = vand.u32 %v755, 4294901760
        %1133 = vmatpush1.msra.mxu0 %v1132
        %1134 = vmatprep.subr.mxu0 0.0
        %v1135 = vand.u32 %v756, 4294901760
        %1136 = vmatpush1.msra.mxu0 %v1135
        %1137 = vmatprep.subr.mxu0 0.0
        %v1138 = vand.u32 %v757, 4294901760
        %1139 = vmatpush1.msra.mxu0 %v1138
        %1140 = vmatprep.subr.mxu0 0.0
        %v1141 = vand.u32 %v758, 4294901760
        %1142 = vmatpush1.msra.mxu0 %v1141
        %1143 = vmatprep.subr.mxu0 0.0
        %v1144 = vand.u32 %v759, 4294901760
        %1145 = vmatpush1.msra.mxu0 %v1144
        %1146 = vmatprep.subr.mxu0 0.0
        %v1147 = vand.u32 %v760, 4294901760
        %1148 = vmatpush1.msra.mxu0 %v1147
        %1149 = vmatprep.subr.mxu0 0.0
        %v1150 = vand.u32 %v761, 4294901760
        %1151 = vmatpush1.msra.mxu0 %v1150
        %1152 = vmatprep.subr.mxu0 0.0
        %v1153 = vand.u32 %v762, 4294901760
        %1154 = vmatpush1.msra.mxu0 %v1153
        %1155 = vmatprep.subr.mxu0 0.0
        %v1156 = vand.u32 %v763, 4294901760
        %1157 = vmatpush1.msra.mxu0 %v1156
        %1158 = vmatprep.subr.mxu0 0.0
        %1159 = vmatpush1.msra.mxu0 0.0
        %1160 = vmatprep.subr.mxu0 0.0
        %1161 = vmatpush1.msra.mxu0 0.0
        %1162 = vmatprep.subr.mxu0 0.0
        %1163 = vmatpush1.msra.mxu0 0.0
        %1164 = vmatprep.subr.mxu0 0.0
        %1165 = vmatpush1.msra.mxu0 0.0
        %1166 = vmatprep.subr.mxu0 0.0
        %1167 = vmatpush1.msra.mxu0 0.0
        %1168 = vmatprep.subr.mxu0 0.0
        %1169 = vmatpush1.msra.mxu0 0.0
        %1170 = vmatprep.subr.mxu0 0.0
        %1171 = vmatpush1.msra.mxu0 0.0
        %1172 = vmatprep.subr.mxu0 0.0
        %1173 = vmatpush1.msra.mxu0 0.0
        %1174 = vmatprep.subr.mxu0 0.0
        %1175 = vmatpush1.msra.mxu0 0.0
        %1176 = vmatprep.subr.mxu0 0.0
        %1177 = vmatpush1.msra.mxu0 0.0
        %1178 = vmatprep.subr.mxu0 0.0
        %1179 = vmatpush1.msra.mxu0 0.0
        %1180 = vmatprep.subr.mxu0 0.0
        %1181 = vmatpush1.msra.mxu0 0.0
        %1182 = vmatprep.subr.mxu0 0.0
        %1183 = vmatpush1.msra.mxu0 0.0
        %1184 = vmatprep.subr.mxu0 0.0
        %1185 = vmatpush1.msra.mxu0 0.0
        %1186 = vmatprep.subr.mxu0 0.0
        %1187 = vmatpush1.msra.mxu0 0.0
        %1188 = vmatprep.subr.mxu0 0.0
        %1189 = vmatpush1.msra.mxu0 0.0
        %1190 = vmatprep.mubr.f32.mxu0 0.0
        %v1191 = vand.u32 %v747, 4294901760
        %v1192 = vsub.f32 %v747, %v1191
        %v1193 = vand.u32 %v1192, 4294901760
        %1194 = vmatmul.mubr.f32.gmra.mrb[0].mxu0 %v1193
        %v1195 = vpop.f32.mrb[0].mxu0
        %v1196 = vadd.f32 %v1107, %v1195
        %v1197 = vpop.f32.mrb[0].mxu0
        %1198 = vdwg.mxu0
        %1199 = vmatprep.subr.mxu0 0.0
        %v1200 = vand.u32 %v748, 4294901760
        %v1201 = vsub.f32 %v748, %v1200
        %v1202 = vand.u32 %v1201, 4294901760
        %1203 = vmatpush1.msra.mxu0 %v1202
        %1204 = vmatprep.subr.mxu0 0.0
        %v1205 = vand.u32 %v749, 4294901760
        %v1206 = vsub.f32 %v749, %v1205
        %v1207 = vand.u32 %v1206, 4294901760
        %1208 = vmatpush1.msra.mxu0 %v1207
        %1209 = vmatprep.subr.mxu0 0.0
        %v1210 = vand.u32 %v750, 4294901760
        %v1211 = vsub.f32 %v750, %v1210
        %v1212 = vand.u32 %v1211, 4294901760
        %1213 = vmatpush1.msra.mxu0 %v1212
        %1214 = vmatprep.subr.mxu0 0.0
        %v1215 = vand.u32 %v751, 4294901760
        %v1216 = vsub.f32 %v751, %v1215
        %v1217 = vand.u32 %v1216, 4294901760
        %1218 = vmatpush1.msra.mxu0 %v1217
        %1219 = vmatprep.subr.mxu0 0.0
        %v1220 = vand.u32 %v752, 4294901760
        %v1221 = vsub.f32 %v752, %v1220
        %v1222 = vand.u32 %v1221, 4294901760
        %1223 = vmatpush1.msra.mxu0 %v1222
        %1224 = vmatprep.subr.mxu0 0.0
        %v1225 = vand.u32 %v753, 4294901760
        %v1226 = vsub.f32 %v753, %v1225
        %v1227 = vand.u32 %v1226, 4294901760
        %1228 = vmatpush1.msra.mxu0 %v1227
        %1229 = vmatprep.subr.mxu0 0.0
        %v1230 = vand.u32 %v754, 4294901760
        %v1231 = vsub.f32 %v754, %v1230
        %v1232 = vand.u32 %v1231, 4294901760
        %1233 = vmatpush1.msra.mxu0 %v1232
        %1234 = vmatprep.subr.mxu0 0.0
        %v1235 = vand.u32 %v755, 4294901760
        %v1236 = vsub.f32 %v755, %v1235
        %v1237 = vand.u32 %v1236, 4294901760
        %1238 = vmatpush1.msra.mxu0 %v1237
        %1239 = vmatprep.subr.mxu0 0.0
        %v1240 = vand.u32 %v756, 4294901760
        %v1241 = vsub.f32 %v756, %v1240
        %v1242 = vand.u32 %v1241, 4294901760
        %1243 = vmatpush1.msra.mxu0 %v1242
        %1244 = vmatprep.subr.mxu0 0.0
        %v1245 = vand.u32 %v757, 4294901760
        %v1246 = vsub.f32 %v757, %v1245
        %v1247 = vand.u32 %v1246, 4294901760
        %1248 = vmatpush1.msra.mxu0 %v1247
        %1249 = vmatprep.subr.mxu0 0.0
        %v1250 = vand.u32 %v758, 4294901760
        %v1251 = vsub.f32 %v758, %v1250
        %v1252 = vand.u32 %v1251, 4294901760
        %1253 = vmatpush1.msra.mxu0 %v1252
        %1254 = vmatprep.subr.mxu0 0.0
        %v1255 = vand.u32 %v759, 4294901760
        %v1256 = vsub.f32 %v759, %v1255
        %v1257 = vand.u32 %v1256, 4294901760
        %1258 = vmatpush1.msra.mxu0 %v1257
        %1259 = vmatprep.subr.mxu0 0.0
        %v1260 = vand.u32 %v760, 4294901760
        %v1261 = vsub.f32 %v760, %v1260
        %v1262 = vand.u32 %v1261, 4294901760
        %1263 = vmatpush1.msra.mxu0 %v1262
        %1264 = vmatprep.subr.mxu0 0.0
        %v1265 = vand.u32 %v761, 4294901760
        %v1266 = vsub.f32 %v761, %v1265
        %v1267 = vand.u32 %v1266, 4294901760
        %1268 = vmatpush1.msra.mxu0 %v1267
        %1269 = vmatprep.subr.mxu0 0.0
        %v1270 = vand.u32 %v762, 4294901760
        %v1271 = vsub.f32 %v762, %v1270
        %v1272 = vand.u32 %v1271, 4294901760
        %1273 = vmatpush1.msra.mxu0 %v1272
        %1274 = vmatprep.subr.mxu0 0.0
        %v1275 = vand.u32 %v763, 4294901760
        %v1276 = vsub.f32 %v763, %v1275
        %v1277 = vand.u32 %v1276, 4294901760
        %1278 = vmatpush1.msra.mxu0 %v1277
        %1279 = vmatprep.subr.mxu0 0.0
        %1280 = vmatpush1.msra.mxu0 0.0
        %1281 = vmatprep.subr.mxu0 0.0
        %1282 = vmatpush1.msra.mxu0 0.0
        %1283 = vmatprep.subr.mxu0 0.0
        %1284 = vmatpush1.msra.mxu0 0.0
        %1285 = vmatprep.subr.mxu0 0.0
        %1286 = vmatpush1.msra.mxu0 0.0
        %1287 = vmatprep.subr.mxu0 0.0
        %1288 = vmatpush1.msra.mxu0 0.0
        %1289 = vmatprep.subr.mxu0 0.0
        %1290 = vmatpush1.msra.mxu0 0.0
        %1291 = vmatprep.subr.mxu0 0.0
        %1292 = vmatpush1.msra.mxu0 0.0
        %1293 = vmatprep.subr.mxu0 0.0
        %1294 = vmatpush1.msra.mxu0 0.0
        %1295 = vmatprep.subr.mxu0 0.0
        %1296 = vmatpush1.msra.mxu0 0.0
        %1297 = vmatprep.subr.mxu0 0.0
        %1298 = vmatpush1.msra.mxu0 0.0
        %1299 = vmatprep.subr.mxu0 0.0
        %1300 = vmatpush1.msra.mxu0 0.0
        %1301 = vmatprep.subr.mxu0 0.0
        %1302 = vmatpush1.msra.mxu0 0.0
        %1303 = vmatprep.subr.mxu0 0.0
        %1304 = vmatpush1.msra.mxu0 0.0
        %1305 = vmatprep.subr.mxu0 0.0
        %1306 = vmatpush1.msra.mxu0 0.0
        %1307 = vmatprep.subr.mxu0 0.0
        %1308 = vmatpush1.msra.mxu0 0.0
        %1309 = vmatprep.subr.mxu0 0.0
        %1310 = vmatpush1.msra.mxu0 0.0
        %1311 = vmatprep.mubr.f32.mxu0 0.0
        %v1312 = vand.u32 %v747, 4294901760
        %1313 = vmatmul.mubr.f32.gmra.mrb[0].mxu0 %v1312
        %v1314 = vpop.f32.mrb[0].mxu0
        %v1315 = vadd.f32 %v1196, %v1314
        %v1316 = vpop.f32.mrb[0].mxu0
        %1317 = vdwg.mxu0
        %1318 = vmatprep.subr.mxu0 0.0
        %v1319 = vand.u32 %v748, 4294901760
        %1320 = vmatpush1.msra.mxu0 %v1319
        %1321 = vmatprep.subr.mxu0 0.0
        %v1322 = vand.u32 %v749, 4294901760
        %1323 = vmatpush1.msra.mxu0 %v1322
        %1324 = vmatprep.subr.mxu0 0.0
        %v1325 = vand.u32 %v750, 4294901760
        %1326 = vmatpush1.msra.mxu0 %v1325
        %1327 = vmatprep.subr.mxu0 0.0
        %v1328 = vand.u32 %v751, 4294901760
        %1329 = vmatpush1.msra.mxu0 %v1328
        %1330 = vmatprep.subr.mxu0 0.0
        %v1331 = vand.u32 %v752, 4294901760
        %1332 = vmatpush1.msra.mxu0 %v1331
        %1333 = vmatprep.subr.mxu0 0.0
        %v1334 = vand.u32 %v753, 4294901760
        %1335 = vmatpush1.msra.mxu0 %v1334
        %1336 = vmatprep.subr.mxu0 0.0
        %v1337 = vand.u32 %v754, 4294901760
        %1338 = vmatpush1.msra.mxu0 %v1337
        %1339 = vmatprep.subr.mxu0 0.0
        %v1340 = vand.u32 %v755, 4294901760
        %1341 = vmatpush1.msra.mxu0 %v1340
        %1342 = vmatprep.subr.mxu0 0.0
        %v1343 = vand.u32 %v756, 4294901760
        %1344 = vmatpush1.msra.mxu0 %v1343
        %1345 = vmatprep.subr.mxu0 0.0
        %v1346 = vand.u32 %v757, 4294901760
        %1347 = vmatpush1.msra.mxu0 %v1346
        %1348 = vmatprep.subr.mxu0 0.0
        %v1349 = vand.u32 %v758, 4294901760
        %1350 = vmatpush1.msra.mxu0 %v1349
        %1351 = vmatprep.subr.mxu0 0.0
        %v1352 = vand.u32 %v759, 4294901760
        %1353 = vmatpush1.msra.mxu0 %v1352
        %1354 = vmatprep.subr.mxu0 0.0
        %v1355 = vand.u32 %v760, 4294901760
        %1356 = vmatpush1.msra.mxu0 %v1355
        %1357 = vmatprep.subr.mxu0 0.0
        %v1358 = vand.u32 %v761, 4294901760
        %1359 = vmatpush1.msra.mxu0 %v1358
        %1360 = vmatprep.subr.mxu0 0.0
        %v1361 = vand.u32 %v762, 4294901760
        %1362 = vmatpush1.msra.mxu0 %v1361
        %1363 = vmatprep.subr.mxu0 0.0
        %v1364 = vand.u32 %v763, 4294901760
        %1365 = vmatpush1.msra.mxu0 %v1364
        %1366 = vmatprep.subr.mxu0 0.0
        %1367 = vmatpush1.msra.mxu0 0.0
        %1368 = vmatprep.subr.mxu0 0.0
        %1369 = vmatpush1.msra.mxu0 0.0
        %1370 = vmatprep.subr.mxu0 0.0
        %1371 = vmatpush1.msra.mxu0 0.0
        %1372 = vmatprep.subr.mxu0 0.0
        %1373 = vmatpush1.msra.mxu0 0.0
        %1374 = vmatprep.subr.mxu0 0.0
        %1375 = vmatpush1.msra.mxu0 0.0
        %1376 = vmatprep.subr.mxu0 0.0
        %1377 = vmatpush1.msra.mxu0 0.0
        %1378 = vmatprep.subr.mxu0 0.0
        %1379 = vmatpush1.msra.mxu0 0.0
        %1380 = vmatprep.subr.mxu0 0.0
        %1381 = vmatpush1.msra.mxu0 0.0
        %1382 = vmatprep.subr.mxu0 0.0
        %1383 = vmatpush1.msra.mxu0 0.0
        %1384 = vmatprep.subr.mxu0 0.0
        %1385 = vmatpush1.msra.mxu0 0.0
        %1386 = vmatprep.subr.mxu0 0.0
        %1387 = vmatpush1.msra.mxu0 0.0
        %1388 = vmatprep.subr.mxu0 0.0
        %1389 = vmatpush1.msra.mxu0 0.0
        %1390 = vmatprep.subr.mxu0 0.0
        %1391 = vmatpush1.msra.mxu0 0.0
        %1392 = vmatprep.subr.mxu0 0.0
        %1393 = vmatpush1.msra.mxu0 0.0
        %1394 = vmatprep.subr.mxu0 0.0
        %1395 = vmatpush1.msra.mxu0 0.0
        %1396 = vmatprep.subr.mxu0 0.0
        %1397 = vmatpush1.msra.mxu0 0.0
        %1398 = vmatprep.mubr.f32.mxu0 0.0
        %v1399 = vand.u32 %v747, 4294901760
        %1400 = vmatmul.mubr.f32.gmra.mrb[0].mxu0 %v1399
        %v1401 = vpop.f32.mrb[0].mxu0
        %v1402 = vadd.f32 %v1315, %v1401
        %v1403 = vpop.f32.mrb[0].mxu0
        %1404 = vdwg.mxu0
        %v1405 = vmul.f32 %v1402, %v1402
        %v1407 = vrot.slane %v1405, 7
        %v1409 = vsub.f32 %v1402, %v1407
        %v1410 = vmax.f32 %v1409, 0.0
        %v1411 = vadd.f32 %v1410, 0.001
        %v1412 = vrsqrt.pop %v1411
        %v1413 = vsel %vm234, %v1402, %v1412
        %v1414 = vld [vmem:[%s4] sm:$0xff]
        %vm1415 = vcmask 64512
        %v1417 = vsel %vm1415, %v1413, 0
        %1419 = vmatprep.subr.mxu0 0.0
        %v1420 = vand.u32 %v1414, 4294901760
        %1421 = vmatpush1.msra.mxu0 %v1420
        %1422 = vmatprep.subr.mxu0 0.0
        %1423 = vmatpush1.msra.mxu0 0.0
        %1424 = vmatprep.subr.mxu0 0.0
        %1425 = vmatpush1.msra.mxu0 0.0
        %1426 = vmatprep.subr.mxu0 0.0
        %1427 = vmatpush1.msra.mxu0 0.0
        %1428 = vmatprep.subr.mxu0 0.0
        %1429 = vmatpush1.msra.mxu0 0.0
        %1430 = vmatprep.subr.mxu0 0.0
        %1431 = vmatpush1.msra.mxu0 0.0
        %1432 = vmatprep.subr.mxu0 0.0
        %1433 = vmatpush1.msra.mxu0 0.0
        %1434 = vmatprep.subr.mxu0 0.0
        %1435 = vmatpush1.msra.mxu0 0.0
        %1436 = vmatprep.subr.mxu0 0.0
        %1437 = vmatpush1.msra.mxu0 0.0
        %1438 = vmatprep.subr.mxu0 0.0
        %1439 = vmatpush1.msra.mxu0 0.0
        %1440 = vmatprep.subr.mxu0 0.0
        %1441 = vmatpush1.msra.mxu0 0.0
        %1442 = vmatprep.subr.mxu0 0.0
        %1443 = vmatpush1.msra.mxu0 0.0
        %1444 = vmatprep.subr.mxu0 0.0
        %1445 = vmatpush1.msra.mxu0 0.0
        %1446 = vmatprep.subr.mxu0 0.0
        %1447 = vmatpush1.msra.mxu0 0.0
        %1448 = vmatprep.subr.mxu0 0.0
        %1449 = vmatpush1.msra.mxu0 0.0
        %1450 = vmatprep.subr.mxu0 0.0
        %1451 = vmatpush1.msra.mxu0 0.0
        %1452 = vmatprep.subr.mxu0 0.0
        %1453 = vmatpush1.msra.mxu0 0.0
        %1454 = vmatprep.subr.mxu0 0.0
        %1455 = vmatpush1.msra.mxu0 0.0
        %1456 = vmatprep.subr.mxu0 0.0
        %1457 = vmatpush1.msra.mxu0 0.0
        %1458 = vmatprep.subr.mxu0 0.0
        %1459 = vmatpush1.msra.mxu0 0.0
        %1460 = vmatprep.subr.mxu0 0.0
        %1461 = vmatpush1.msra.mxu0 0.0
        %1462 = vmatprep.subr.mxu0 0.0
        %1463 = vmatpush1.msra.mxu0 0.0
        %1464 = vmatprep.subr.mxu0 0.0
        %1465 = vmatpush1.msra.mxu0 0.0
        %1466 = vmatprep.subr.mxu0 0.0
        %1467 = vmatpush1.msra.mxu0 0.0
        %1468 = vmatprep.subr.mxu0 0.0
        %1469 = vmatpush1.msra.mxu0 0.0
        %1470 = vmatprep.subr.mxu0 0.0
        %1471 = vmatpush1.msra.mxu0 0.0
        %1472 = vmatprep.subr.mxu0 0.0
        %1473 = vmatpush1.msra.mxu0 0.0
        %1474 = vmatprep.subr.mxu0 0.0
        %1475 = vmatpush1.msra.mxu0 0.0
        %1476 = vmatprep.subr.mxu0 0.0
        %1477 = vmatpush1.msra.mxu0 0.0
        %1478 = vmatprep.subr.mxu0 0.0
        %1479 = vmatpush1.msra.mxu0 0.0
        %1480 = vmatprep.subr.mxu0 0.0
        %1481 = vmatpush1.msra.mxu0 0.0
        %1482 = vmatprep.subr.mxu0 0.0
        %1483 = vmatpush1.msra.mxu0 0.0
        %1484 = vmatprep.mubr.f32.mxu0 0.0
        %v1485 = vand.u32 %v1417, 4294901760
        %v1486 = vsub.f32 %v1417, %v1485
        %v1487 = vand.u32 %v1486, 4294901760
        %v1488 = vsub.f32 %v1486, %v1487
        %v1489 = vand.u32 %v1488, 4294901760
        %1490 = vmatmul.mubr.f32.gmra.mrb[0].mxu0 %v1489
        %v1491 = vpop.f32.mrb[0].mxu0
        %v1492 = vadd.f32 0.0, %v1491
        %v1493 = vpop.f32.mrb[0].mxu0
        %1494 = vdwg.mxu0
        %1495 = vmatprep.subr.mxu0 0.0
        %v1496 = vand.u32 %v1414, 4294901760
        %v1497 = vsub.f32 %v1414, %v1496
        %v1498 = vand.u32 %v1497, 4294901760
        %v1499 = vsub.f32 %v1497, %v1498
        %v1500 = vand.u32 %v1499, 4294901760
        %1501 = vmatpush1.msra.mxu0 %v1500
        %1502 = vmatprep.subr.mxu0 0.0
        %1503 = vmatpush1.msra.mxu0 0.0
        %1504 = vmatprep.subr.mxu0 0.0
        %1505 = vmatpush1.msra.mxu0 0.0
        %1506 = vmatprep.subr.mxu0 0.0
        %1507 = vmatpush1.msra.mxu0 0.0
        %1508 = vmatprep.subr.mxu0 0.0
        %1509 = vmatpush1.msra.mxu0 0.0
        %1510 = vmatprep.subr.mxu0 0.0
        %1511 = vmatpush1.msra.mxu0 0.0
        %1512 = vmatprep.subr.mxu0 0.0
        %1513 = vmatpush1.msra.mxu0 0.0
        %1514 = vmatprep.subr.mxu0 0.0
        %1515 = vmatpush1.msra.mxu0 0.0
        %1516 = vmatprep.subr.mxu0 0.0
        %1517 = vmatpush1.msra.mxu0 0.0
        %1518 = vmatprep.subr.mxu0 0.0
        %1519 = vmatpush1.msra.mxu0 0.0
        %1520 = vmatprep.subr.mxu0 0.0
        %1521 = vmatpush1.msra.mxu0 0.0
        %1522 = vmatprep.subr.mxu0 0.0
        %1523 = vmatpush1.msra.mxu0 0.0
        %1524 = vmatprep.subr.mxu0 0.0
        %1525 = vmatpush1.msra.mxu0 0.0
        %1526 = vmatprep.subr.mxu0 0.0
        %1527 = vmatpush1.msra.mxu0 0.0
        %1528 = vmatprep.subr.mxu0 0.0
        %1529 = vmatpush1.msra.mxu0 0.0
        %1530 = vmatprep.subr.mxu0 0.0
        %1531 = vmatpush1.msra.mxu0 0.0
        %1532 = vmatprep.subr.mxu0 0.0
        %1533 = vmatpush1.msra.mxu0 0.0
        %1534 = vmatprep.subr.mxu0 0.0
        %1535 = vmatpush1.msra.mxu0 0.0
        %1536 = vmatprep.subr.mxu0 0.0
        %1537 = vmatpush1.msra.mxu0 0.0
        %1538 = vmatprep.subr.mxu0 0.0
        %1539 = vmatpush1.msra.mxu0 0.0
        %1540 = vmatprep.subr.mxu0 0.0
        %1541 = vmatpush1.msra.mxu0 0.0
        %1542 = vmatprep.subr.mxu0 0.0
        %1543 = vmatpush1.msra.mxu0 0.0
        %1544 = vmatprep.subr.mxu0 0.0
        %1545 = vmatpush1.msra.mxu0 0.0
        %1546 = vmatprep.subr.mxu0 0.0
        %1547 = vmatpush1.msra.mxu0 0.0
        %1548 = vmatprep.subr.mxu0 0.0
        %1549 = vmatpush1.msra.mxu0 0.0
        %1550 = vmatprep.subr.mxu0 0.0
        %1551 = vmatpush1.msra.mxu0 0.0
        %1552 = vmatprep.subr.mxu0 0.0
        %1553 = vmatpush1.msra.mxu0 0.0
        %1554 = vmatprep.subr.mxu0 0.0
        %1555 = vmatpush1.msra.mxu0 0.0
        %1556 = vmatprep.subr.mxu0 0.0
        %1557 = vmatpush1.msra.mxu0 0.0
        %1558 = vmatprep.subr.mxu0 0.0
        %1559 = vmatpush1.msra.mxu0 0.0
        %1560 = vmatprep.subr.mxu0 0.0
        %1561 = vmatpush1.msra.mxu0 0.0
        %1562 = vmatprep.subr.mxu0 0.0
        %1563 = vmatpush1.msra.mxu0 0.0
        %1564 = vmatprep.mubr.f32.mxu0 0.0
        %v1565 = vand.u32 %v1417, 4294901760
        %1566 = vmatmul.mubr.f32.gmra.mrb[0].mxu0 %v1565
        %v1567 = vpop.f32.mrb[0].mxu0
        %v1568 = vadd.f32 %v1492, %v1567
        %v1569 = vpop.f32.mrb[0].mxu0
        %1570 = vdwg.mxu0
        %1571 = vmatprep.subr.mxu0 0.0
        %v1572 = vand.u32 %v1414, 4294901760
        %v1573 = vsub.f32 %v1414, %v1572
        %1574 = vmatpush1.msra.mxu0 %v1573
        %1575 = vmatprep.subr.mxu0 0.0
        %1576 = vmatpush1.msra.mxu0 0.0
        %1577 = vmatprep.subr.mxu0 0.0
        %1578 = vmatpush1.msra.mxu0 0.0
        %1579 = vmatprep.subr.mxu0 0.0
        %1580 = vmatpush1.msra.mxu0 0.0
        %1581 = vmatprep.subr.mxu0 0.0
        %1582 = vmatpush1.msra.mxu0 0.0
        %1583 = vmatprep.subr.mxu0 0.0
        %1584 = vmatpush1.msra.mxu0 0.0
        %1585 = vmatprep.subr.mxu0 0.0
        %1586 = vmatpush1.msra.mxu0 0.0
        %1587 = vmatprep.subr.mxu0 0.0
        %1588 = vmatpush1.msra.mxu0 0.0
        %1589 = vmatprep.subr.mxu0 0.0
        %1590 = vmatpush1.msra.mxu0 0.0
        %1591 = vmatprep.subr.mxu0 0.0
        %1592 = vmatpush1.msra.mxu0 0.0
        %1593 = vmatprep.subr.mxu0 0.0
        %1594 = vmatpush1.msra.mxu0 0.0
        %1595 = vmatprep.subr.mxu0 0.0
        %1596 = vmatpush1.msra.mxu0 0.0
        %1597 = vmatprep.subr.mxu0 0.0
        %1598 = vmatpush1.msra.mxu0 0.0
        %1599 = vmatprep.subr.mxu0 0.0
        %1600 = vmatpush1.msra.mxu0 0.0
        %1601 = vmatprep.subr.mxu0 0.0
        %1602 = vmatpush1.msra.mxu0 0.0
        %1603 = vmatprep.subr.mxu0 0.0
        %1604 = vmatpush1.msra.mxu0 0.0
        %1605 = vmatprep.subr.mxu0 0.0
        %1606 = vmatpush1.msra.mxu0 0.0
        %1607 = vmatprep.subr.mxu0 0.0
        %1608 = vmatpush1.msra.mxu0 0.0
        %1609 = vmatprep.subr.mxu0 0.0
        %1610 = vmatpush1.msra.mxu0 0.0
        %1611 = vmatprep.subr.mxu0 0.0
        %1612 = vmatpush1.msra.mxu0 0.0
        %1613 = vmatprep.subr.mxu0 0.0
        %1614 = vmatpush1.msra.mxu0 0.0
        %1615 = vmatprep.subr.mxu0 0.0
        %1616 = vmatpush1.msra.mxu0 0.0
        %1617 = vmatprep.subr.mxu0 0.0
        %1618 = vmatpush1.msra.mxu0 0.0
        %1619 = vmatprep.subr.mxu0 0.0
        %1620 = vmatpush1.msra.mxu0 0.0
        %1621 = vmatprep.subr.mxu0 0.0
        %1622 = vmatpush1.msra.mxu0 0.0
        %1623 = vmatprep.subr.mxu0 0.0
        %1624 = vmatpush1.msra.mxu0 0.0
        %1625 = vmatprep.subr.mxu0 0.0
        %1626 = vmatpush1.msra.mxu0 0.0
        %1627 = vmatprep.subr.mxu0 0.0
        %1628 = vmatpush1.msra.mxu0 0.0
        %1629 = vmatprep.subr.mxu0 0.0
        %1630 = vmatpush1.msra.mxu0 0.0
        %1631 = vmatprep.subr.mxu0 0.0
        %1632 = vmatpush1.msra.mxu0 0.0
        %1633 = vmatprep.subr.mxu0 0.0
        %1634 = vmatpush1.msra.mxu0 0.0
        %1635 = vmatprep.subr.mxu0 0.0
        %1636 = vmatpush1.msra.mxu0 0.0
        %1637 = vmatprep.mubr.f32.mxu0 0.0
        %v1638 = vand.u32 %v1417, 4294901760
        %v1639 = vsub.f32 %v1417, %v1638
        %1640 = vmatmul.mubr.f32.gmra.mrb[0].mxu0 %v1639
        %v1641 = vpop.f32.mrb[0].mxu0
        %v1642 = vadd.f32 %v1568, %v1641
        %v1643 = vpop.f32.mrb[0].mxu0
        %1644 = vdwg.mxu0
        %1645 = vmatprep.subr.mxu0 0.0
        %v1646 = vand.u32 %v1414, 4294901760
        %1647 = vmatpush1.msra.mxu0 %v1646
        %1648 = vmatprep.subr.mxu0 0.0
        %1649 = vmatpush1.msra.mxu0 0.0
        %1650 = vmatprep.subr.mxu0 0.0
        %1651 = vmatpush1.msra.mxu0 0.0
        %1652 = vmatprep.subr.mxu0 0.0
        %1653 = vmatpush1.msra.mxu0 0.0
        %1654 = vmatprep.subr.mxu0 0.0
        %1655 = vmatpush1.msra.mxu0 0.0
        %1656 = vmatprep.subr.mxu0 0.0
        %1657 = vmatpush1.msra.mxu0 0.0
        %1658 = vmatprep.subr.mxu0 0.0
        %1659 = vmatpush1.msra.mxu0 0.0
        %1660 = vmatprep.subr.mxu0 0.0
        %1661 = vmatpush1.msra.mxu0 0.0
        %1662 = vmatprep.subr.mxu0 0.0
        %1663 = vmatpush1.msra.mxu0 0.0
        %1664 = vmatprep.subr.mxu0 0.0
        %1665 = vmatpush1.msra.mxu0 0.0
        %1666 = vmatprep.subr.mxu0 0.0
        %1667 = vmatpush1.msra.mxu0 0.0
        %1668 = vmatprep.subr.mxu0 0.0
        %1669 = vmatpush1.msra.mxu0 0.0
        %1670 = vmatprep.subr.mxu0 0.0
        %1671 = vmatpush1.msra.mxu0 0.0
        %1672 = vmatprep.subr.mxu0 0.0
        %1673 = vmatpush1.msra.mxu0 0.0
        %1674 = vmatprep.subr.mxu0 0.0
        %1675 = vmatpush1.msra.mxu0 0.0
        %1676 = vmatprep.subr.mxu0 0.0
        %1677 = vmatpush1.msra.mxu0 0.0
        %1678 = vmatprep.subr.mxu0 0.0
        %1679 = vmatpush1.msra.mxu0 0.0
        %1680 = vmatprep.subr.mxu0 0.0
        %1681 = vmatpush1.msra.mxu0 0.0
        %1682 = vmatprep.subr.mxu0 0.0
        %1683 = vmatpush1.msra.mxu0 0.0
        %1684 = vmatprep.subr.mxu0 0.0
        %1685 = vmatpush1.msra.mxu0 0.0
        %1686 = vmatprep.subr.mxu0 0.0
        %1687 = vmatpush1.msra.mxu0 0.0
        %1688 = vmatprep.subr.mxu0 0.0
        %1689 = vmatpush1.msra.mxu0 0.0
        %1690 = vmatprep.subr.mxu0 0.0
        %1691 = vmatpush1.msra.mxu0 0.0
        %1692 = vmatprep.subr.mxu0 0.0
        %1693 = vmatpush1.msra.mxu0 0.0
        %1694 = vmatprep.subr.mxu0 0.0
        %1695 = vmatpush1.msra.mxu0 0.0
        %1696 = vmatprep.subr.mxu0 0.0
        %1697 = vmatpush1.msra.mxu0 0.0
        %1698 = vmatprep.subr.mxu0 0.0
        %1699 = vmatpush1.msra.mxu0 0.0
        %1700 = vmatprep.subr.mxu0 0.0
        %1701 = vmatpush1.msra.mxu0 0.0
        %1702 = vmatprep.subr.mxu0 0.0
        %1703 = vmatpush1.msra.mxu0 0.0
        %1704 = vmatprep.subr.mxu0 0.0
        %1705 = vmatpush1.msra.mxu0 0.0
        %1706 = vmatprep.subr.mxu0 0.0
        %1707 = vmatpush1.msra.mxu0 0.0
        %1708 = vmatprep.subr.mxu0 0.0
        %1709 = vmatpush1.msra.mxu0 0.0
        %1710 = vmatprep.mubr.f32.mxu0 0.0
        %v1711 = vand.u32 %v1417, 4294901760
        %v1712 = vsub.f32 %v1417, %v1711
        %v1713 = vand.u32 %v1712, 4294901760
        %1714 = vmatmul.mubr.f32.gmra.mrb[0].mxu0 %v1713
        %v1715 = vpop.f32.mrb[0].mxu0
        %v1716 = vadd.f32 %v1642, %v1715
        %v1717 = vpop.f32.mrb[0].mxu0
        %1718 = vdwg.mxu0
        %1719 = vmatprep.subr.mxu0 0.0
        %v1720 = vand.u32 %v1414, 4294901760
        %v1721 = vsub.f32 %v1414, %v1720
        %v1722 = vand.u32 %v1721, 4294901760
        %1723 = vmatpush1.msra.mxu0 %v1722
        %1724 = vmatprep.subr.mxu0 0.0
        %1725 = vmatpush1.msra.mxu0 0.0
        %1726 = vmatprep.subr.mxu0 0.0
        %1727 = vmatpush1.msra.mxu0 0.0
        %1728 = vmatprep.subr.mxu0 0.0
        %1729 = vmatpush1.msra.mxu0 0.0
        %1730 = vmatprep.subr.mxu0 0.0
        %1731 = vmatpush1.msra.mxu0 0.0
        %1732 = vmatprep.subr.mxu0 0.0
        %1733 = vmatpush1.msra.mxu0 0.0
        %1734 = vmatprep.subr.mxu0 0.0
        %1735 = vmatpush1.msra.mxu0 0.0
        %1736 = vmatprep.subr.mxu0 0.0
        %1737 = vmatpush1.msra.mxu0 0.0
        %1738 = vmatprep.subr.mxu0 0.0
        %1739 = vmatpush1.msra.mxu0 0.0
        %1740 = vmatprep.subr.mxu0 0.0
        %1741 = vmatpush1.msra.mxu0 0.0
        %1742 = vmatprep.subr.mxu0 0.0
        %1743 = vmatpush1.msra.mxu0 0.0
        %1744 = vmatprep.subr.mxu0 0.0
        %1745 = vmatpush1.msra.mxu0 0.0
        %1746 = vmatprep.subr.mxu0 0.0
        %1747 = vmatpush1.msra.mxu0 0.0
        %1748 = vmatprep.subr.mxu0 0.0
        %1749 = vmatpush1.msra.mxu0 0.0
        %1750 = vmatprep.subr.mxu0 0.0
        %1751 = vmatpush1.msra.mxu0 0.0
        %1752 = vmatprep.subr.mxu0 0.0
        %1753 = vmatpush1.msra.mxu0 0.0
        %1754 = vmatprep.subr.mxu0 0.0
        %1755 = vmatpush1.msra.mxu0 0.0
        %1756 = vmatprep.subr.mxu0 0.0
        %1757 = vmatpush1.msra.mxu0 0.0
        %1758 = vmatprep.subr.mxu0 0.0
        %1759 = vmatpush1.msra.mxu0 0.0
        %1760 = vmatprep.subr.mxu0 0.0
        %1761 = vmatpush1.msra.mxu0 0.0
        %1762 = vmatprep.subr.mxu0 0.0
        %1763 = vmatpush1.msra.mxu0 0.0
        %1764 = vmatprep.subr.mxu0 0.0
        %1765 = vmatpush1.msra.mxu0 0.0
        %1766 = vmatprep.subr.mxu0 0.0
        %1767 = vmatpush1.msra.mxu0 0.0
        %1768 = vmatprep.subr.mxu0 0.0
        %1769 = vmatpush1.msra.mxu0 0.0
        %1770 = vmatprep.subr.mxu0 0.0
        %1771 = vmatpush1.msra.mxu0 0.0
        %1772 = vmatprep.subr.mxu0 0.0
        %1773 = vmatpush1.msra.mxu0 0.0
        %1774 = vmatprep.subr.mxu0 0.0
        %1775 = vmatpush1.msra.mxu0 0.0
        %1776 = vmatprep.subr.mxu0 0.0
        %1777 = vmatpush1.msra.mxu0 0.0
        %1778 = vmatprep.subr.mxu0 0.0
        %1779 = vmatpush1.msra.mxu0 0.0
        %1780 = vmatprep.subr.mxu0 0.0
        %1781 = vmatpush1.msra.mxu0 0.0
        %1782 = vmatprep.subr.mxu0 0.0
        %1783 = vmatpush1.msra.mxu0 0.0
        %1784 = vmatprep.subr.mxu0 0.0
        %1785 = vmatpush1.msra.mxu0 0.0
        %1786 = vmatprep.mubr.f32.mxu0 0.0
        %v1787 = vand.u32 %v1417, 4294901760
        %1788 = vmatmul.mubr.f32.gmra.mrb[0].mxu0 %v1787
        %v1789 = vpop.f32.mrb[0].mxu0
        %v1790 = vadd.f32 %v1716, %v1789
        %v1791 = vpop.f32.mrb[0].mxu0
        %1792 = vdwg.mxu0
        %1793 = vmatprep.subr.mxu0 0.0
        %v1794 = vand.u32 %v1414, 4294901760
        %1795 = vmatpush1.msra.mxu0 %v1794
        %1796 = vmatprep.subr.mxu0 0.0
        %1797 = vmatpush1.msra.mxu0 0.0
        %1798 = vmatprep.subr.mxu0 0.0
        %1799 = vmatpush1.msra.mxu0 0.0
        %1800 = vmatprep.subr.mxu0 0.0
        %1801 = vmatpush1.msra.mxu0 0.0
        %1802 = vmatprep.subr.mxu0 0.0
        %1803 = vmatpush1.msra.mxu0 0.0
        %1804 = vmatprep.subr.mxu0 0.0
        %1805 = vmatpush1.msra.mxu0 0.0
        %1806 = vmatprep.subr.mxu0 0.0
        %1807 = vmatpush1.msra.mxu0 0.0
        %1808 = vmatprep.subr.mxu0 0.0
        %1809 = vmatpush1.msra.mxu0 0.0
        %1810 = vmatprep.subr.mxu0 0.0
        %1811 = vmatpush1.msra.mxu0 0.0
        %1812 = vmatprep.subr.mxu0 0.0
        %1813 = vmatpush1.msra.mxu0 0.0
        %1814 = vmatprep.subr.mxu0 0.0
        %1815 = vmatpush1.msra.mxu0 0.0
        %1816 = vmatprep.subr.mxu0 0.0
        %1817 = vmatpush1.msra.mxu0 0.0
        %1818 = vmatprep.subr.mxu0 0.0
        %1819 = vmatpush1.msra.mxu0 0.0
        %1820 = vmatprep.subr.mxu0 0.0
        %1821 = vmatpush1.msra.mxu0 0.0
        %1822 = vmatprep.subr.mxu0 0.0
        %1823 = vmatpush1.msra.mxu0 0.0
        %1824 = vmatprep.subr.mxu0 0.0
        %1825 = vmatpush1.msra.mxu0 0.0
        %1826 = vmatprep.subr.mxu0 0.0
        %1827 = vmatpush1.msra.mxu0 0.0
        %1828 = vmatprep.subr.mxu0 0.0
        %1829 = vmatpush1.msra.mxu0 0.0
        %1830 = vmatprep.subr.mxu0 0.0
        %1831 = vmatpush1.msra.mxu0 0.0
        %1832 = vmatprep.subr.mxu0 0.0
        %1833 = vmatpush1.msra.mxu0 0.0
        %1834 = vmatprep.subr.mxu0 0.0
        %1835 = vmatpush1.msra.mxu0 0.0
        %1836 = vmatprep.subr.mxu0 0.0
        %1837 = vmatpush1.msra.mxu0 0.0
        %1838 = vmatprep.subr.mxu0 0.0
        %1839 = vmatpush1.msra.mxu0 0.0
        %1840 = vmatprep.subr.mxu0 0.0
        %1841 = vmatpush1.msra.mxu0 0.0
        %1842 = vmatprep.subr.mxu0 0.0
        %1843 = vmatpush1.msra.mxu0 0.0
        %1844 = vmatprep.subr.mxu0 0.0
        %1845 = vmatpush1.msra.mxu0 0.0
        %1846 = vmatprep.subr.mxu0 0.0
        %1847 = vmatpush1.msra.mxu0 0.0
        %1848 = vmatprep.subr.mxu0 0.0
        %1849 = vmatpush1.msra.mxu0 0.0
        %1850 = vmatprep.subr.mxu0 0.0
        %1851 = vmatpush1.msra.mxu0 0.0
        %1852 = vmatprep.subr.mxu0 0.0
        %1853 = vmatpush1.msra.mxu0 0.0
        %1854 = vmatprep.subr.mxu0 0.0
        %1855 = vmatpush1.msra.mxu0 0.0
        %1856 = vmatprep.subr.mxu0 0.0
        %1857 = vmatpush1.msra.mxu0 0.0
        %1858 = vmatprep.mubr.f32.mxu0 0.0
        %v1859 = vand.u32 %v1417, 4294901760
        %1860 = vmatmul.mubr.f32.gmra.mrb[0].mxu0 %v1859
        %v1861 = vpop.f32.mrb[0].mxu0
        %v1862 = vadd.f32 %v1790, %v1861
        %v1863 = vpop.f32.mrb[0].mxu0
        %1864 = vdwg.mxu0
        %v1865 = vlaneseq
        %v1866 = vshrl.u32 %v1865, 7
        %v1867 = vsub.s32 0, %v1866
        %v1868 = vrot.slane %v1862, %v1867
        %v1869 = vsub.f32 %v731, %v1868
        %v1870 = vlaneseq
        %v1871 = vshrl.u32 %v1870, 7
        %v1872 = vsub.s32 1, %v1871
        %v1873 = vrot.slane %v1862, %v1872
        %v1874 = vmul.f32 %v1869, %v1873
        %v1875 = vld [vmem:[%s2] sm:$0xff]
        %1877 = vset.pattern.permute.xlu0 0
        %1878 = vperm.xlu0 %1877, %v1875
        %v1879 = vpop.permute.xlu0 %1878
        %v1881 = vmul.f32 %v1874, %v1879
        %v1882 = vmax.f32 %v1881, 0.0
        %1883 = vst [vmem:[%s217] sm:$0xff] %v1882
        %s1884 = sand.u32 %s137, 1
        %s1885 = scalar_lea.sflag [#allocation3], %s1884
        %s1886 = sand.u32 %s137, 1
        %s1887 = smul.addr %s1886, 8
        %s1888 = scalar_lea.vmem [#allocation2], %s1887
        // Predicated region
        $region41: #{tpu_custom_call.1} parent=39 // pred_check
          %p1889 = pneg %p147
        $region42: #{tpu_custom_call.1} parent=39 // pred_check_branch
          %1891 = sbr.rel (%p1889) target = $region44
        $region43: #{tpu_custom_call.1} parent=39 // pred_region
          %s1893 = ssub.s32 128, 128
          %1894 = vsyncadd %s1885, %s1893
          %s1895 = smul.addr %s19, 128
          %s1896 = scalar_lea.hbm %s5, %s1895
          %s1898 = sshll.u32 %s1888, 4
          %s1899 = int_to_ptr.vmem [resolvable:$true] %s1898
          %1901 = dma.vmem_to_hbm [thread:$0]  %s1899, 128, %s1896, %s1885
        $region44: #{tpu_custom_call.1} parent=39 // pred_fallthru
          _
      $region40: #{tpu_custom_call.1} parent=5 // pred_fallthru
        _
      %p1902 = scmp.le.s32.totalorder 2, %s14
      // Predicated region
      $region45: #{tpu_custom_call.1} parent=5 // pred_check
        %p1903 = pneg %p1902
      $region46: #{tpu_custom_call.1} parent=5 // pred_check_branch
        %1905 = sbr.rel (%p1903) target = $region48
      $region47: #{tpu_custom_call.1} parent=5 // pred_region
        %s1906 = ssub.s32 %s14, 2
        // Predicated region
        $region49: #{tpu_custom_call.1} parent=47 // pred_check
          %p1907 = pneg %p153
        $region50: #{tpu_custom_call.1} parent=47 // pred_check_branch
          %1909 = sbr.rel (%p1907) target = $region52
        $region51: #{tpu_custom_call.1} parent=47 // pred_region
          %s1910 = sand.u32 %s138, 1
          %s1911 = scalar_lea.sflag [#allocation3], %s1910
          %s1912 = sand.u32 %s138, 1
          %s1913 = smul.addr %s1912, 8
          %s1914 = scalar_lea.vmem [#allocation2], %s1913
          %1915 = dma.done %s1911, 128
        $region52: #{tpu_custom_call.1} parent=47 // pred_fallthru
          _
      $region48: #{tpu_custom_call.1} parent=5 // pred_fallthru
        _
    $region6: #{tpu_custom_call.1} parent=1 // loop_footer
      %s18 = sadd.s32 1, %s14
    $region7: #{tpu_custom_call.1} parent=1 // loop_footer_branch
      %13 = sbr.rel target = $region3
    $region8: #{tpu_custom_call.1} parent=1 // loop_exit
      _
    %1916 = vsyncpa [#allocation3], 1
    %s1917 = scalar_lea.sflag [#allocation3], 1
    %1918 = vsyncpa %s1917, 1

</llo_original>
